<compile_context>
chip_gen: v7x
topology: tpu7x:2x2x1
jax: 0.10.0
libtpu: 0.0.40
codegen_flags: <defaults>
</compile_context>

<pallas_src>
import functools

import jax
import jax.numpy as jnp
import numpy as np
from jax.experimental import pallas as pl
from jax.experimental.pallas import tpu as pltpu


def _round_up(x, m):
    return (x + m - 1) // m * m


def conv_block_kernel(x_ref, w_ref, mask_ref, o_ref, patches_ref, *,
                      nb, c_pad, p_cols, offsets, count, eps, neg_slope):
    """One (batch-block, C_out-tile) grid step.

    x_ref       : (nb, c_pad, P_in)      flat zero-padded input, channels padded to 8k
    w_ref       : (co_tile, 27*c_pad)    weights with the 27 taps folded into K
    mask_ref    : (1, p_cols)            1.0 at the H*W*D valid flat positions
    o_ref       : (nb, co_tile, p_cols)  lane-dense output (padded-flat layout)
    patches_ref : (27*c_pad, nb*p_cols)  im2col slab, persists across C_out tiles
    """
    # Build the im2col slab only on the first C_out tile of each batch block: it
    # depends only on the batch index, and the scratch persists across the
    # "arbitrary" C_out-tile axis, so the other tiles reuse it.
    @pl.when(pl.program_id(1) == 0)
    def _build_patches():
        for b in range(nb):
            xb = x_ref[b]                                     # (c_pad, P_in)
            for t, off in enumerate(offsets):
                # Layout-preserving lane shift (static slice of the flat row).
                # c_pad % 8 == 0 and p_cols % 128 == 0 make this a full
                # row-group, unmasked store with no adjacent-tap RMW.
                patches_ref[t * c_pad:(t + 1) * c_pad,
                            b * p_cols:(b + 1) * p_cols] = xb[:, off:off + p_cols]

    # Single MXU matmul: K = 27*c_pad, N = nb*p_cols, f32 accumulation.
    acc = jnp.dot(w_ref[...], patches_ref[...],
                  preferred_element_type=jnp.float32)         # (co_tile, nb*p_cols)

    mask = mask_ref[...]                                      # (1, p_cols)
    inv_n = 1.0 / count
    for b in range(nb):
        # Vreg-aligned lane slice (p_cols is a multiple of 128).
        seg = acc[:, b * p_cols:(b + 1) * p_cols]             # (co_tile, p_cols)
        masked = seg * mask
        s1 = jnp.sum(masked, axis=1, keepdims=True)
        s2 = jnp.sum(masked * seg, axis=1, keepdims=True)
        mean = s1 * inv_n
        var = s2 * inv_n - mean * mean                        # biased, single pass
        normed = (seg - mean) * jax.lax.rsqrt(var + eps)
        act = jnp.where(normed >= 0, normed, neg_slope * normed)
        o_ref[b] = act.astype(o_ref.dtype)


def conv_block(image, weight, *, eps=1e-5, neg_slope=0.2, co_tile=None, nb=1):
    """image: (N, C_in, H, W, D), weight: (C_out, C_in, 3, 3, 3) -> (N, C_out, H, W, D)."""
    N, C_in, H, W, D = image.shape
    C_out = weight.shape[0]
    assert weight.shape == (C_out, C_in, 3, 3, 3)
    assert N % nb == 0

    if co_tile is None:
        # Keep the whole C_out per step for small channel counts; aim toward the
        # MXU row count for large ones.
        co_tile = C_out if C_out <= 256 else 256
    assert C_out % co_tile == 0

    # ---- flat padded-spatial geometry -------------------------------------
    Hp, Wp, Dp = H + 2, W + 2, D + 2
    L = Wp * Dp                         # flat stride of one H-row
    P = Hp * L                          # padded volume size
    max_valid = (H - 1) * L + (W - 1) * Dp + (D - 1)   # last valid output index
    max_off = 2 * L + 2 * Dp + 2                       # largest tap offset
    p_cols = _round_up(max_valid + 1, 128)             # lane-dense slab/output width
    p_in = _round_up(max_off + p_cols, 128)            # input width covering all taps
    c_pad = _round_up(C_in, 8)                         # full-sublane channel groups
    K = 27 * c_pad

    # ---- input: pad channels + 1-voxel halo, flatten spatial, pad lanes ----
    x = jnp.pad(image, ((0, 0), (0, c_pad - C_in), (1, 1), (1, 1), (1, 1)))
    x = x.reshape(N, c_pad, P)
    x = jnp.pad(x, ((0, 0), (0, 0), (0, p_in - P)))

    # ---- weight: fold taps into K (tap-major, channel-minor) ---------------
    w = jnp.pad(weight, ((0, 0), (0, c_pad - C_in), (0, 0), (0, 0), (0, 0)))
    w2 = jnp.transpose(w, (0, 2, 3, 4, 1)).reshape(C_out, K)

    # ---- valid-position mask for the InstanceNorm statistics ---------------
    m = np.zeros((Hp, Wp, Dp), np.float32)
    m[:H, :W, :D] = 1.0
    m = m.reshape(-1)
    m = m[:p_cols] if p_cols <= P else np.pad(m, (0, p_cols - P))
    mask = jnp.asarray(m).reshape(1, p_cols)

    offsets = tuple(dz * L + dy * Dp + dx
                    for dz in range(3) for dy in range(3) for dx in range(3))

    kernel = functools.partial(
        conv_block_kernel, nb=nb, c_pad=c_pad, p_cols=p_cols, offsets=offsets,
        count=float(H * W * D), eps=eps, neg_slope=neg_slope)

    # ---- VMEM budget: computed, capped for v7x's 64 MiB physical VMEM ------
    itemsize = jnp.dtype(image.dtype).itemsize
    est = itemsize * (K * nb * p_cols             # patches slab
                      + 2 * nb * c_pad * p_in     # double-buffered input block
                      + 2 * co_tile * K           # double-buffered weight block
                      + 2 * nb * co_tile * p_cols  # double-buffered output block
                      + p_cols)                   # mask
    vmem_limit = int(min(48 << 20, max(16 << 20, 2 * est)))

    out = pl.pallas_call(
        kernel,
        out_shape=jax.ShapeDtypeStruct((N, C_out, p_cols), image.dtype),
        grid_spec=pltpu.PrefetchScalarGridSpec(
            num_scalar_prefetch=0,
            grid=(N // nb, C_out // co_tile),
            in_specs=[
                # Input block stays resident across the C_out-tile axis.
                pl.BlockSpec((nb, c_pad, p_in), lambda n, j: (n, 0, 0)),
                pl.BlockSpec((co_tile, K), lambda n, j: (j, 0)),
                pl.BlockSpec((1, p_cols), lambda n, j: (0, 0)),
            ],
            out_specs=pl.BlockSpec((nb, co_tile, p_cols), lambda n, j: (n, j, 0)),
            scratch_shapes=[pltpu.VMEM((K, nb * p_cols), image.dtype)],
        ),
        compiler_params=pltpu.CompilerParams(
            # Batch blocks are independent ("parallel" -> megacore); the C_out
            # tile axis reuses the patches scratch, so it must stay "arbitrary".
            dimension_semantics=("parallel", "arbitrary"),
            vmem_limit_bytes=vmem_limit,
        ),
    )(x, w2, mask)

    # Layout plumbing only: drop the padded-flat garbage columns and recover the
    # PyTorch (N, C_out, H, W, D) view.
    if p_cols < P:
        out = jnp.pad(out, ((0, 0), (0, 0), (0, P - p_cols)))
    out = out[:, :, :P].reshape(N, C_out, Hp, Wp, Dp)[:, :, :H, :W, :D]
    return out


def reference(image, weight, eps=1e-5, neg_slope=0.2):
    """Pure-JAX/XLA reference matching the PyTorch ConvBlock forward."""
    dn = jax.lax.conv_dimension_numbers(image.shape, weight.shape,
                                        ("NCHWD", "OIHWD", "NCHWD"))
    conv = jax.lax.conv_general_dilated(image, weight, (1, 1, 1), "SAME",
                                        dimension_numbers=dn)
    mean = jnp.mean(conv, axis=(2, 3, 4), keepdims=True)
    var = jnp.mean((conv - mean) ** 2, axis=(2, 3, 4), keepdims=True)
    normed = (conv - mean) * jax.lax.rsqrt(var + eps)
    return jnp.where(normed >= 0, normed, neg_slope * normed)


if __name__ == "__main__":
    key = jax.random.PRNGKey(0)
    k_img, k_w = jax.random.split(key)

    N, C_in, C_out, H, W, D = 2, 4, 8, 8, 8, 8
    image = jax.random.normal(k_img, (N, C_in, H, W, D), jnp.float32)

    # Deterministic Conv3d weight init (kaiming-uniform-style bound), bias=False.
    fan_in = C_in * 3 * 3 * 3
    bound = 1.0 / (fan_in ** 0.5)
    weight = jax.random.uniform(k_w, (C_out, C_in, 3, 3, 3), jnp.float32,
                                minval=-bound, maxval=bound)

    out = jax.block_until_ready(conv_block(image, weight))
    assert out.shape == (N, C_out, H, W, D), out.shape

    ref = reference(image, weight)
    max_err = float(jnp.max(jnp.abs(out - ref)))
    assert max_err < 1e-3, f"mismatch vs reference: {max_err}"

    print("KERNEL_OK")
</pallas_src>

<mosaic_0001>
module attributes {stable_mosaic.version = 11 : i64} {
  func.func @conv_block_kernel(%arg0: i32, %arg1: i32, %arg2: memref<1x8x1152xf32, #tpu.memory_space<vmem>>, %arg3: memref<8x216xf32, #tpu.memory_space<vmem>>, %arg4: memref<1x896xf32, #tpu.memory_space<vmem>>, %arg5: memref<1x8x896xf32, #tpu.memory_space<vmem>>, %arg6: memref<216x896xf32, #tpu.memory_space<vmem>>) attributes {dimension_semantics = [#tpu.dimension_semantics<parallel>, #tpu.dimension_semantics<arbitrary>], iteration_bounds = array<i64: 2, 1>, scalar_prefetch = 0 : i64, scratch_operands = 1 : i64, tpu.core_type = #tpu.core_type<tc>, window_params = [{transform_indices = @transform_0, window_bounds = array<i64: 1, 8, 1152>}, {transform_indices = @transform_1, window_bounds = array<i64: 8, 216>}, {pipeline_mode = #tpu.pipeline_mode<synchronous>, transform_indices = @transform_2, window_bounds = array<i64: 1, 896>}, {transform_indices = @transform_3, window_bounds = array<i64: 1, 8, 896>}]} {
    %c0_i32 = arith.constant 0 : i32
    %0 = arith.cmpi eq, %arg1, %c0_i32 : i32
    %1 = arith.extui %0 : i1 to i32
    %c0_i32_0 = arith.constant 0 : i32
    %2 = arith.cmpi ne, %1, %c0_i32_0 : i32
    scf.if %2 {
      %c0_16 = arith.constant 0 : index
      %c0_17 = arith.constant 0 : index
      %c0_18 = arith.constant 0 : index
      %35 = vector.load %arg2[%c0_16, %c0_17, %c0_18] : memref<1x8x1152xf32, #tpu.memory_space<vmem>>, vector<1x8x1152xf32>
      %36 = vector.shape_cast %35 : vector<1x8x1152xf32> to vector<8x1152xf32>
      %37 = vector.extract_strided_slice %36 {offsets = [0, 0], sizes = [8, 896], strides = [1, 1]} : vector<8x1152xf32> to vector<8x896xf32>
      %c0_19 = arith.constant 0 : index
      %c0_20 = arith.constant 0 : index
      %38 = vector.load %arg6[%c0_19, %c0_20] : memref<216x896xf32, #tpu.memory_space<vmem>>, vector<8x896xf32>
      tpu.vector_store %arg6[%c0_19, %c0_20], %37 {strides = array<i32>} : memref<216x896xf32, #tpu.memory_space<vmem>>, vector<8x896xf32>,
      %39 = vector.extract_strided_slice %36 {offsets = [0, 1], sizes = [8, 896], strides = [1, 1]} : vector<8x1152xf32> to vector<8x896xf32>
      %c8 = arith.constant 8 : index
      %c0_21 = arith.constant 0 : index
      %40 = vector.load %arg6[%c8, %c0_21] : memref<216x896xf32, #tpu.memory_space<vmem>>, vector<8x896xf32>
      tpu.vector_store %arg6[%c8, %c0_21], %39 {strides = array<i32>} : memref<216x896xf32, #tpu.memory_space<vmem>>, vector<8x896xf32>,
      %41 = vector.extract_strided_slice %36 {offsets = [0, 2], sizes = [8, 896], strides = [1, 1]} : vector<8x1152xf32> to vector<8x896xf32>
      %c16 = arith.constant 16 : index
      %c0_22 = arith.constant 0 : index
      %42 = vector.load %arg6[%c16, %c0_22] : memref<216x896xf32, #tpu.memory_space<vmem>>, vector<8x896xf32>
      tpu.vector_store %arg6[%c16, %c0_22], %41 {strides = array<i32>} : memref<216x896xf32, #tpu.memory_space<vmem>>, vector<8x896xf32>,
      %43 = vector.extract_strided_slice %36 {offsets = [0, 10], sizes = [8, 896], strides = [1, 1]} : vector<8x1152xf32> to vector<8x896xf32>
      %c24 = arith.constant 24 : index
      %c0_23 = arith.constant 0 : index
      %44 = vector.load %arg6[%c24, %c0_23] : memref<216x896xf32, #tpu.memory_space<vmem>>, vector<8x896xf32>
      tpu.vector_store %arg6[%c24, %c0_23], %43 {strides = array<i32>} : memref<216x896xf32, #tpu.memory_space<vmem>>, vector<8x896xf32>,
      %45 = vector.extract_strided_slice %36 {offsets = [0, 11], sizes = [8, 896], strides = [1, 1]} : vector<8x1152xf32> to vector<8x896xf32>
      %c32 = arith.constant 32 : index
      %c0_24 = arith.constant 0 : index
      %46 = vector.load %arg6[%c32, %c0_24] : memref<216x896xf32, #tpu.memory_space<vmem>>, vector<8x896xf32>
      tpu.vector_store %arg6[%c32, %c0_24], %45 {strides = array<i32>} : memref<216x896xf32, #tpu.memory_space<vmem>>, vector<8x896xf32>,
      %47 = vector.extract_strided_slice %36 {offsets = [0, 12], sizes = [8, 896], strides = [1, 1]} : vector<8x1152xf32> to vector<8x896xf32>
      %c40 = arith.constant 40 : index
      %c0_25 = arith.constant 0 : index
      %48 = vector.load %arg6[%c40, %c0_25] : memref<216x896xf32, #tpu.memory_space<vmem>>, vector<8x896xf32>
      tpu.vector_store %arg6[%c40, %c0_25], %47 {strides = array<i32>} : memref<216x896xf32, #tpu.memory_space<vmem>>, vector<8x896xf32>,
      %49 = vector.extract_strided_slice %36 {offsets = [0, 20], sizes = [8, 896], strides = [1, 1]} : vector<8x1152xf32> to vector<8x896xf32>
      %c48 = arith.constant 48 : index
      %c0_26 = arith.constant 0 : index
      %50 = vector.load %arg6[%c48, %c0_26] : memref<216x896xf32, #tpu.memory_space<vmem>>, vector<8x896xf32>
      tpu.vector_store %arg6[%c48, %c0_26], %49 {strides = array<i32>} : memref<216x896xf32, #tpu.memory_space<vmem>>, vector<8x896xf32>,
      %51 = vector.extract_strided_slice %36 {offsets = [0, 21], sizes = [8, 896], strides = [1, 1]} : vector<8x1152xf32> to vector<8x896xf32>
      %c56 = arith.constant 56 : index
      %c0_27 = arith.constant 0 : index
      %52 = vector.load %arg6[%c56, %c0_27] : memref<216x896xf32, #tpu.memory_space<vmem>>, vector<8x896xf32>
      tpu.vector_store %arg6[%c56, %c0_27], %51 {strides = array<i32>} : memref<216x896xf32, #tpu.memory_space<vmem>>, vector<8x896xf32>,
      %53 = vector.extract_strided_slice %36 {offsets = [0, 22], sizes = [8, 896], strides = [1, 1]} : vector<8x1152xf32> to vector<8x896xf32>
      %c64 = arith.constant 64 : index
      %c0_28 = arith.constant 0 : index
      %54 = vector.load %arg6[%c64, %c0_28] : memref<216x896xf32, #tpu.memory_space<vmem>>, vector<8x896xf32>
      tpu.vector_store %arg6[%c64, %c0_28], %53 {strides = array<i32>} : memref<216x896xf32, #tpu.memory_space<vmem>>, vector<8x896xf32>,
      %55 = vector.extract_strided_slice %36 {offsets = [0, 100], sizes = [8, 896], strides = [1, 1]} : vector<8x1152xf32> to vector<8x896xf32>
      %c72 = arith.constant 72 : index
      %c0_29 = arith.constant 0 : index
      %56 = vector.load %arg6[%c72, %c0_29] : memref<216x896xf32, #tpu.memory_space<vmem>>, vector<8x896xf32>
      tpu.vector_store %arg6[%c72, %c0_29], %55 {strides = array<i32>} : memref<216x896xf32, #tpu.memory_space<vmem>>, vector<8x896xf32>,
      %57 = vector.extract_strided_slice %36 {offsets = [0, 101], sizes = [8, 896], strides = [1, 1]} : vector<8x1152xf32> to vector<8x896xf32>
      %c80 = arith.constant 80 : index
      %c0_30 = arith.constant 0 : index
      %58 = vector.load %arg6[%c80, %c0_30] : memref<216x896xf32, #tpu.memory_space<vmem>>, vector<8x896xf32>
      tpu.vector_store %arg6[%c80, %c0_30], %57 {strides = array<i32>} : memref<216x896xf32, #tpu.memory_space<vmem>>, vector<8x896xf32>,
      %59 = vector.extract_strided_slice %36 {offsets = [0, 102], sizes = [8, 896], strides = [1, 1]} : vector<8x1152xf32> to vector<8x896xf32>
      %c88 = arith.constant 88 : index
      %c0_31 = arith.constant 0 : index
      %60 = vector.load %arg6[%c88, %c0_31] : memref<216x896xf32, #tpu.memory_space<vmem>>, vector<8x896xf32>
      tpu.vector_store %arg6[%c88, %c0_31], %59 {strides = array<i32>} : memref<216x896xf32, #tpu.memory_space<vmem>>, vector<8x896xf32>,
      %61 = vector.extract_strided_slice %36 {offsets = [0, 110], sizes = [8, 896], strides = [1, 1]} : vector<8x1152xf32> to vector<8x896xf32>
      %c96 = arith.constant 96 : index
      %c0_32 = arith.constant 0 : index
      %62 = vector.load %arg6[%c96, %c0_32] : memref<216x896xf32, #tpu.memory_space<vmem>>, vector<8x896xf32>
      tpu.vector_store %arg6[%c96, %c0_32], %61 {strides = array<i32>} : memref<216x896xf32, #tpu.memory_space<vmem>>, vector<8x896xf32>,
      %63 = vector.extract_strided_slice %36 {offsets = [0, 111], sizes = [8, 896], strides = [1, 1]} : vector<8x1152xf32> to vector<8x896xf32>
      %c104 = arith.constant 104 : index
      %c0_33 = arith.constant 0 : index
      %64 = vector.load %arg6[%c104, %c0_33] : memref<216x896xf32, #tpu.memory_space<vmem>>, vector<8x896xf32>
      tpu.vector_store %arg6[%c104, %c0_33], %63 {strides = array<i32>} : memref<216x896xf32, #tpu.memory_space<vmem>>, vector<8x896xf32>,
      %65 = vector.extract_strided_slice %36 {offsets = [0, 112], sizes = [8, 896], strides = [1, 1]} : vector<8x1152xf32> to vector<8x896xf32>
      %c112 = arith.constant 112 : index
      %c0_34 = arith.constant 0 : index
      %66 = vector.load %arg6[%c112, %c0_34] : memref<216x896xf32, #tpu.memory_space<vmem>>, vector<8x896xf32>
      tpu.vector_store %arg6[%c112, %c0_34], %65 {strides = array<i32>} : memref<216x896xf32, #tpu.memory_space<vmem>>, vector<8x896xf32>,
      %67 = vector.extract_strided_slice %36 {offsets = [0, 120], sizes = [8, 896], strides = [1, 1]} : vector<8x1152xf32> to vector<8x896xf32>
      %c120 = arith.constant 120 : index
      %c0_35 = arith.constant 0 : index
      %68 = vector.load %arg6[%c120, %c0_35] : memref<216x896xf32, #tpu.memory_space<vmem>>, vector<8x896xf32>
      tpu.vector_store %arg6[%c120, %c0_35], %67 {strides = array<i32>} : memref<216x896xf32, #tpu.memory_space<vmem>>, vector<8x896xf32>,
      %69 = vector.extract_strided_slice %36 {offsets = [0, 121], sizes = [8, 896], strides = [1, 1]} : vector<8x1152xf32> to vector<8x896xf32>
      %c128 = arith.constant 128 : index
      %c0_36 = arith.constant 0 : index
      %70 = vector.load %arg6[%c128, %c0_36] : memref<216x896xf32, #tpu.memory_space<vmem>>, vector<8x896xf32>
      tpu.vector_store %arg6[%c128, %c0_36], %69 {strides = array<i32>} : memref<216x896xf32, #tpu.memory_space<vmem>>, vector<8x896xf32>,
      %71 = vector.extract_strided_slice %36 {offsets = [0, 122], sizes = [8, 896], strides = [1, 1]} : vector<8x1152xf32> to vector<8x896xf32>
      %c136 = arith.constant 136 : index
      %c0_37 = arith.constant 0 : index
      %72 = vector.load %arg6[%c136, %c0_37] : memref<216x896xf32, #tpu.memory_space<vmem>>, vector<8x896xf32>
      tpu.vector_store %arg6[%c136, %c0_37], %71 {strides = array<i32>} : memref<216x896xf32, #tpu.memory_space<vmem>>, vector<8x896xf32>,
      %73 = vector.extract_strided_slice %36 {offsets = [0, 200], sizes = [8, 896], strides = [1, 1]} : vector<8x1152xf32> to vector<8x896xf32>
      %c144 = arith.constant 144 : index
      %c0_38 = arith.constant 0 : index
      %74 = vector.load %arg6[%c144, %c0_38] : memref<216x896xf32, #tpu.memory_space<vmem>>, vector<8x896xf32>
      tpu.vector_store %arg6[%c144, %c0_38], %73 {strides = array<i32>} : memref<216x896xf32, #tpu.memory_space<vmem>>, vector<8x896xf32>,
      %75 = vector.extract_strided_slice %36 {offsets = [0, 201], sizes = [8, 896], strides = [1, 1]} : vector<8x1152xf32> to vector<8x896xf32>
      %c152 = arith.constant 152 : index
      %c0_39 = arith.constant 0 : index
      %76 = vector.load %arg6[%c152, %c0_39] : memref<216x896xf32, #tpu.memory_space<vmem>>, vector<8x896xf32>
      tpu.vector_store %arg6[%c152, %c0_39], %75 {strides = array<i32>} : memref<216x896xf32, #tpu.memory_space<vmem>>, vector<8x896xf32>,
      %77 = vector.extract_strided_slice %36 {offsets = [0, 202], sizes = [8, 896], strides = [1, 1]} : vector<8x1152xf32> to vector<8x896xf32>
      %c160 = arith.constant 160 : index
      %c0_40 = arith.constant 0 : index
      %78 = vector.load %arg6[%c160, %c0_40] : memref<216x896xf32, #tpu.memory_space<vmem>>, vector<8x896xf32>
      tpu.vector_store %arg6[%c160, %c0_40], %77 {strides = array<i32>} : memref<216x896xf32, #tpu.memory_space<vmem>>, vector<8x896xf32>,
      %79 = vector.extract_strided_slice %36 {offsets = [0, 210], sizes = [8, 896], strides = [1, 1]} : vector<8x1152xf32> to vector<8x896xf32>
      %c168 = arith.constant 168 : index
      %c0_41 = arith.constant 0 : index
      %80 = vector.load %arg6[%c168, %c0_41] : memref<216x896xf32, #tpu.memory_space<vmem>>, vector<8x896xf32>
      tpu.vector_store %arg6[%c168, %c0_41], %79 {strides = array<i32>} : memref<216x896xf32, #tpu.memory_space<vmem>>, vector<8x896xf32>,
      %81 = vector.extract_strided_slice %36 {offsets = [0, 211], sizes = [8, 896], strides = [1, 1]} : vector<8x1152xf32> to vector<8x896xf32>
      %c176 = arith.constant 176 : index
      %c0_42 = arith.constant 0 : index
      %82 = vector.load %arg6[%c176, %c0_42] : memref<216x896xf32, #tpu.memory_space<vmem>>, vector<8x896xf32>
      tpu.vector_store %arg6[%c176, %c0_42], %81 {strides = array<i32>} : memref<216x896xf32, #tpu.memory_space<vmem>>, vector<8x896xf32>,
      %83 = vector.extract_strided_slice %36 {offsets = [0, 212], sizes = [8, 896], strides = [1, 1]} : vector<8x1152xf32> to vector<8x896xf32>
      %c184 = arith.constant 184 : index
      %c0_43 = arith.constant 0 : index
      %84 = vector.load %arg6[%c184, %c0_43] : memref<216x896xf32, #tpu.memory_space<vmem>>, vector<8x896xf32>
      tpu.vector_store %arg6[%c184, %c0_43], %83 {strides = array<i32>} : memref<216x896xf32, #tpu.memory_space<vmem>>, vector<8x896xf32>,
      %85 = vector.extract_strided_slice %36 {offsets = [0, 220], sizes = [8, 896], strides = [1, 1]} : vector<8x1152xf32> to vector<8x896xf32>
      %c192 = arith.constant 192 : index
      %c0_44 = arith.constant 0 : index
      %86 = vector.load %arg6[%c192, %c0_44] : memref<216x896xf32, #tpu.memory_space<vmem>>, vector<8x896xf32>
      tpu.vector_store %arg6[%c192, %c0_44], %85 {strides = array<i32>} : memref<216x896xf32, #tpu.memory_space<vmem>>, vector<8x896xf32>,
      %87 = vector.extract_strided_slice %36 {offsets = [0, 221], sizes = [8, 896], strides = [1, 1]} : vector<8x1152xf32> to vector<8x896xf32>
      %c200 = arith.constant 200 : index
      %c0_45 = arith.constant 0 : index
      %88 = vector.load %arg6[%c200, %c0_45] : memref<216x896xf32, #tpu.memory_space<vmem>>, vector<8x896xf32>
      tpu.vector_store %arg6[%c200, %c0_45], %87 {strides = array<i32>} : memref<216x896xf32, #tpu.memory_space<vmem>>, vector<8x896xf32>,
      %89 = vector.extract_strided_slice %36 {offsets = [0, 222], sizes = [8, 896], strides = [1, 1]} : vector<8x1152xf32> to vector<8x896xf32>
      %c208 = arith.constant 208 : index
      %c0_46 = arith.constant 0 : index
      %90 = vector.load %arg6[%c208, %c0_46] : memref<216x896xf32, #tpu.memory_space<vmem>>, vector<8x896xf32>
      tpu.vector_store %arg6[%c208, %c0_46], %89 {strides = array<i32>} : memref<216x896xf32, #tpu.memory_space<vmem>>, vector<8x896xf32>,
    } else {
    }
    %c0 = arith.constant 0 : index
    %c0_1 = arith.constant 0 : index
    %3 = vector.load %arg3[%c0, %c0_1] : memref<8x216xf32, #tpu.memory_space<vmem>>, vector<8x216xf32>
    %c0_2 = arith.constant 0 : index
    %c0_3 = arith.constant 0 : index
    %4 = vector.load %arg6[%c0_2, %c0_3] : memref<216x896xf32, #tpu.memory_space<vmem>>, vector<216x896xf32>
    %cst = arith.constant dense<0.000000e+00> : vector<8x896xf32>
    %5 = tpu.matmul %3, %4, %cst {dimension_numbers = #tpu.dot_dimension_numbers<[1], [0], [0], [1], [0, 0, 1, 1], [], []>} : vector<8x216xf32>, vector<216x896xf32>, vector<8x896xf32> -> vector<8x896xf32>
    %c0_4 = arith.constant 0 : index
    %c0_5 = arith.constant 0 : index
    %6 = vector.load %arg4[%c0_4, %c0_5] : memref<1x896xf32, #tpu.memory_space<vmem>>, vector<1x896xf32>
    %7 = vector.broadcast %6 : vector<1x896xf32> to vector<8x896xf32>
    %8 = arith.mulf %5, %7 : vector<8x896xf32>
    %cst_6 = arith.constant dense<0.000000e+00> : vector<8xf32>
    %9 = vector.multi_reduction <add>, %8, %cst_6 [1] : vector<8x896xf32> to vector<8xf32>
    %10 = vector.shape_cast %9 : vector<8xf32> to vector<8x1xf32>
    %11 = arith.mulf %8, %5 : vector<8x896xf32>
    %cst_7 = arith.constant dense<0.000000e+00> : vector<8xf32>
    %12 = vector.multi_reduction <add>, %11, %cst_7 [1] : vector<8x896xf32> to vector<8xf32>
    %13 = vector.shape_cast %12 : vector<8xf32> to vector<8x1xf32>
    %cst_8 = arith.constant 0.001953125 : f32
    %14 = vector.broadcast %cst_8 : f32 to vector<8x1xf32>
    %15 = arith.mulf %10, %14 : vector<8x1xf32>
    %cst_9 = arith.constant 0.001953125 : f32
    %16 = vector.broadcast %cst_9 : f32 to vector<8x1xf32>
    %17 = arith.mulf %13, %16 : vector<8x1xf32>
    %18 = arith.mulf %15, %15 : vector<8x1xf32>
    %19 = arith.subf %17, %18 : vector<8x1xf32>
    %20 = vector.broadcast %15 : vector<8x1xf32> to vector<8x896xf32>
    %21 = arith.subf %5, %20 : vector<8x896xf32>
    %cst_10 = arith.constant 9.99999974E-6 : f32
    %22 = vector.broadcast %cst_10 : f32 to vector<8x1xf32>
    %23 = arith.addf %19, %22 : vector<8x1xf32>
    %24 = math.rsqrt %23 : vector<8x1xf32>
    %25 = vector.broadcast %24 : vector<8x1xf32> to vector<8x896xf32>
    %26 = arith.mulf %21, %25 : vector<8x896xf32>
    %cst_11 = arith.constant 0.000000e+00 : f32
    %27 = vector.broadcast %cst_11 : f32 to vector<8x896xf32>
    %28 = arith.cmpf oge, %26, %27 : vector<8x896xf32>
    %cst_12 = arith.constant 2.000000e-01 : f32
    %29 = vector.broadcast %cst_12 : f32 to vector<8x896xf32>
    %30 = arith.mulf %29, %26 : vector<8x896xf32>
    %31 = arith.select %28, %26, %30 : vector<8x896xi1>, vector<8x896xf32>
    %c0_13 = arith.constant 0 : index
    %c0_14 = arith.constant 0 : index
    %c0_15 = arith.constant 0 : index
    %32 = vector.load %arg5[%c0_13, %c0_14, %c0_15] : memref<1x8x896xf32, #tpu.memory_space<vmem>>, vector<1x8x896xf32>
    %33 = vector.shape_cast %32 : vector<1x8x896xf32> to vector<8x896xf32>
    %34 = vector.shape_cast %31 : vector<8x896xf32> to vector<1x8x896xf32>
    tpu.vector_store %arg5[%c0_13, %c0_14, %c0_15], %34 {strides = array<i32>} : memref<1x8x896xf32, #tpu.memory_space<vmem>>, vector<1x8x896xf32>,
    return
  }
  func.func @transform_0(%arg0: i32, %arg1: i32) -> (i32, i32, i32) {
    %c0_i32 = arith.constant 0 : i32
    %c0_i32_0 = arith.constant 0 : i32
    %c0_i32_1 = arith.constant 0 : i32
    return %arg0, %c0_i32, %c0_i32_0 : i32, i32, i32
  }
  func.func @transform_1(%arg0: i32, %arg1: i32) -> (i32, i32) {
    %c0_i32 = arith.constant 0 : i32
    %c0_i32_0 = arith.constant 0 : i32
    return %arg1, %c0_i32 : i32, i32
  }
  func.func @transform_2(%arg0: i32, %arg1: i32) -> (i32, i32) {
    %c0_i32 = arith.constant 0 : i32
    %c0_i32_0 = arith.constant 0 : i32
    %c0_i32_1 = arith.constant 0 : i32
    return %c0_i32, %c0_i32_0 : i32, i32
  }
  func.func @transform_3(%arg0: i32, %arg1: i32) -> (i32, i32, i32) {
    %c0_i32 = arith.constant 0 : i32
    %c0_i32_0 = arith.constant 0 : i32
    return %arg0, %arg1, %c0_i32 : i32, i32, i32
  }
}

</mosaic_0001>

<llo_original>
// kernel: tpu_custom_call.1
$region0: #{tpu_custom_call.1}
  #allocation0 [shape = 'u32[]', space=smem, size = 0x4, offset = 0x4, fixed_abs, tag = 'smem constant byte address 0x4 - core index']
  #allocation1 [shape = 'u32[144,128]{1,0:T(1,128)}', space=vmem, size = 0x12000, scoped, tag = 'internal scratch']
  #allocation2 [shape = 'f32[216,896]{1,0:T(8,128)}', space=vmem, size = 0xbd000, scoped, tag = 'scratch operand']
  %s0 = inlined_call_operand.hbm [shape: f32[2,8,1152], index: 0, kind: input, shape index: {}]
  %s1 = inlined_call_operand.hbm [shape: f32[8,216], index: 1, kind: input, shape index: {}]
  %s2 = inlined_call_operand.vmem [shape: f32[1,896], index: 2, kind: input, shape index: {}]
  %s3 = inlined_call_operand.hbm [shape: f32[2,8,896], index: 3, kind: output, shape index: {}]
  %s4 = sld [smem:[#allocation0]]
  $region57: #{tpu_custom_call.1} parent=0
    _
  %s6 = ssub.s32 1, %s4
  %s7 = scalar_select 0, %s6, %s4
  $region1: #{tpu_custom_call.1} parent=0
    #allocation3 [shape = 'u8[73728]{0}', space=vmem, size = 0x12000, scoped, tag = 'input window, operand 0']
    #allocation4 [shape = 's32[2]{0}', space=sflag, size = 0x8, scoped, tag = 'scoped memory for tpu_custom_call.1']
    #allocation5 [shape = 's32[2]{0}', space=sflag, size = 0x8, scoped, tag = 'scoped memory for tpu_custom_call.1']
    #allocation6 [shape = 'u8[8192]{0}', space=vmem, size = 0x2000, scoped, tag = 'input window, operand 1, single buffered']
    #allocation7 [shape = 's32[1]{0}', space=sflag, size = 0x4, scoped, tag = 'scoped memory for tpu_custom_call.1']
    #allocation8 [shape = 'u8[57344]{0}', space=vmem, size = 0xe000, scoped, tag = 'output window, operand 0']
    %8 = vsyncpa [#allocation4], 0
    %s9 = scalar_lea.sflag [#allocation4], 1
    %10 = vsyncpa %s9, 0
    %11 = vsyncpa [#allocation7], 0
    %12 = vsyncpa [#allocation5], 0
    %s13 = scalar_lea.sflag [#allocation5], 1
    %14 = vsyncpa %s13, 0
    loop: start=0, step=1, limit=4
    $region2: #{tpu_custom_call.1} parent=1 // loop_pre_header
      _
    $region3: #{tpu_custom_call.1} parent=1 // loop_header
      %s16 = sphi 0, %s20
      %p17 = scmp.ge.s32.totalorder %s16, 4
      %s23 = sphi 0, %s35
      %s24 = sphi 0, %s31
      %s25 = sphi 0, %s23
      %s26 = sphi 0, %s24
      %s27 = sphi 0, %s25
      %s28 = sphi 0, %s26
      %s38 = sphi 0, %s40
      %s41 = sphi 0, %s38
      %s42 = sphi 0, %s41
      %s58 = sphi 0, %s42
      %s64 = sphi 0, %s66
      %s67 = sphi 0, %s64
      %s68 = sphi 0, %s67
      %s84 = sphi 0, %s68
      %s88 = sphi 0, %s88
      %s90 = sphi 0, %s88
      %s91 = sphi 0, %s90
      %s105 = sphi 0, %s91
      %s113 = sphi 0, %s115
      %s116 = sphi 0, %s113
      %s117 = sphi 0, %s116
      %s133 = sphi 0, %s117
    $region4: #{tpu_custom_call.1} parent=1 // loop_header_branch
      %19 = sbr.rel (%p17) target = $region8
    $region5: #{tpu_custom_call.1} parent=1 // loop_body
      %s21 = ssub.s32 %s16, 1
      %s22 = ssub.s32 %s16, 2
      %s29 = sadd.s32 1, %s24
      %p30 = scmp.ge.s32.totalorder %s29, 1
      %s31 = scalar_select %p30, 0, %s29
      %s32 = sadd.s32 1, %s23
      %s33 = scalar_select %p30, %s32, %s23
      %p34 = scmp.ge.s32.totalorder %s33, 2
      %s35 = scalar_select %p34, 0, %s33
      %s36 = ssub.s32 %s23, %s35
      %p37 = scmp.eq.s32.totalorder %s36, 0
      %s39 = sadd.s32 %s38, 1
      %s40 = scalar_select %p37, %s38, %s39
      %p43 = pneg %p37
      %p44 = scmp.eq.s32.totalorder %s16, 1
      %p45 = por %p43, %p44
      %p46 = scmp.ne.s32.totalorder %s38, %s41
      %p47 = scmp.eq.s32.totalorder %s16, 0
      %p48 = por %p46, %p47
      %p49 = scmp.ne.s32.totalorder %s38, %s41
      %p50 = scmp.eq.s32.totalorder %s21, 1
      %p51 = por %p49, %p50
      %p52 = scmp.ne.s32.totalorder %s41, %s42
      %p53 = scmp.eq.s32.totalorder %s21, 0
      %p54 = por %p52, %p53
      %p55 = scmp.ne.s32.totalorder %s41, %s42
      %p56 = scmp.eq.s32.totalorder %s22, 1
      %p57 = por %p55, %p56
      %p59 = scmp.ne.s32.totalorder %s42, %s58
      %p60 = scmp.eq.s32.totalorder %s22, 0
      %p61 = por %p59, %p60
      %s62 = ssub.s32 %s24, %s31
      %p63 = scmp.eq.s32.totalorder %s62, 0
      %s65 = sadd.s32 %s64, 1
      %s66 = scalar_select %p63, %s64, %s65
      %p69 = pneg %p63
      %p70 = scmp.eq.s32.totalorder %s16, 1
      %p71 = por %p69, %p70
      %p72 = scmp.ne.s32.totalorder %s64, %s67
      %p73 = scmp.eq.s32.totalorder %s16, 0
      %p74 = por %p72, %p73
      %p75 = scmp.ne.s32.totalorder %s64, %s67
      %p76 = scmp.eq.s32.totalorder %s21, 1
      %p77 = por %p75, %p76
      %p78 = scmp.ne.s32.totalorder %s67, %s68
      %p79 = scmp.eq.s32.totalorder %s21, 0
      %p80 = por %p78, %p79
      %p81 = scmp.ne.s32.totalorder %s67, %s68
      %p82 = scmp.eq.s32.totalorder %s22, 1
      %p83 = por %p81, %p82
      %p85 = scmp.ne.s32.totalorder %s68, %s84
      %p86 = scmp.eq.s32.totalorder %s22, 0
      %p87 = por %p85, %p86
      %s89 = sadd.s32 %s88, 1
      %p92 = scmp.eq.s32.totalorder %s16, 1
      %p93 = scmp.ne.s32.totalorder %s88, %s90
      %p94 = scmp.eq.s32.totalorder %s16, 0
      %p95 = por %p93, %p94
      %p96 = scmp.ne.s32.totalorder %s88, %s90
      %p97 = scmp.eq.s32.totalorder %s21, 1
      %p98 = por %p96, %p97
      %p99 = scmp.ne.s32.totalorder %s90, %s91
      %p100 = scmp.eq.s32.totalorder %s21, 0
      %p101 = por %p99, %p100
      %p102 = scmp.ne.s32.totalorder %s90, %s91
      %p103 = scmp.eq.s32.totalorder %s22, 1
      %p104 = por %p102, %p103
      %p106 = scmp.ne.s32.totalorder %s91, %s105
      %p107 = scmp.eq.s32.totalorder %s22, 0
      %p108 = por %p106, %p107
      %s109 = ssub.s32 %s23, %s35
      %s110 = ssub.s32 %s24, %s31
      %s111 = sor.u32 %s109, %s110
      %p112 = scmp.eq.s32.totalorder %s111, 0
      %s114 = sadd.s32 %s113, 1
      %s115 = scalar_select %p112, %s113, %s114
      %p118 = pneg %p112
      %p119 = scmp.eq.s32.totalorder %s16, 1
      %p120 = por %p118, %p119
      %p121 = scmp.ne.s32.totalorder %s113, %s116
      %p122 = scmp.eq.s32.totalorder %s16, 0
      %p123 = por %p121, %p122
      %p124 = scmp.ne.s32.totalorder %s113, %s116
      %p125 = scmp.eq.s32.totalorder %s21, 1
      %p126 = por %p124, %p125
      %p127 = scmp.ne.s32.totalorder %s116, %s117
      %p128 = scmp.eq.s32.totalorder %s21, 0
      %p129 = por %p127, %p128
      %p130 = scmp.ne.s32.totalorder %s116, %s117
      %p131 = scmp.eq.s32.totalorder %s22, 1
      %p132 = por %p130, %p131
      %p134 = scmp.ne.s32.totalorder %s117, %s133
      %p135 = scmp.eq.s32.totalorder %s22, 0
      %p136 = por %p134, %p135
      %p137 = scmp.le.s32.totalorder 1, %s16
      %p138 = scmp.lt.s32.totalorder %s16, 3
      %p139 = pnand %p137, %p138
      %p140 = pneg %p139
      // Predicated region
      $region9: #{tpu_custom_call.1} parent=5 // pred_check
        _
      $region10: #{tpu_custom_call.1} parent=5 // pred_check_branch
        %142 = sbr.rel (%p139) target = $region12
      $region11: #{tpu_custom_call.1} parent=5 // pred_region
        %s143 = ssub.s32 %s16, 1
        // Predicated region
        $region13: #{tpu_custom_call.1} parent=11 // pred_check
          %p144 = pneg %p80
        $region14: #{tpu_custom_call.1} parent=11 // pred_check_branch
          %146 = sbr.rel (%p144) target = $region16
        $region15: #{tpu_custom_call.1} parent=11 // pred_region
          %s148 = ssub.s32 256, 256
          %149 = vsyncadd [#allocation7], %s148
          %s150 = smul.addr %s26, 2
          %s151 = smul.addr %s150, 128
          %s152 = scalar_lea.hbm %s1, %s151
          %s154 = sshll.u32 [#allocation6], 4
          %s155 = int_to_ptr.vmem [resolvable:$true] %s154
          %157 = dma.hbm_to_vmem [thread:$0]  %s152, 256, %s155, [#allocation7]
        $region16: #{tpu_custom_call.1} parent=11 // pred_fallthru
          _
        // Predicated region
        $region17: #{tpu_custom_call.1} parent=11 // pred_check
          %p158 = pneg %p101
        $region18: #{tpu_custom_call.1} parent=11 // pred_check_branch
          %160 = sbr.rel (%p158) target = $region20
        $region19: #{tpu_custom_call.1} parent=11 // pred_region
          _
        $region20: #{tpu_custom_call.1} parent=11 // pred_fallthru
          _
      $region12: #{tpu_custom_call.1} parent=5 // pred_fallthru
        _
      %p161 = scmp.lt.s32.totalorder %s16, 2
      // Predicated region
      $region21: #{tpu_custom_call.1} parent=5 // pred_check
        %p162 = pneg %p161
      $region22: #{tpu_custom_call.1} parent=5 // pred_check_branch
        %164 = sbr.rel (%p162) target = $region24
      $region23: #{tpu_custom_call.1} parent=5 // pred_region
        // Predicated region
        $region25: #{tpu_custom_call.1} parent=23 // pred_check
          %p165 = pneg %p48
        $region26: #{tpu_custom_call.1} parent=23 // pred_check_branch
          %167 = sbr.rel (%p165) target = $region28
        $region27: #{tpu_custom_call.1} parent=23 // pred_region
          %s168 = sand.u32 %s38, 1
          %s169 = scalar_lea.sflag [#allocation4], %s168
          %s170 = sand.u32 %s38, 1
          %s171 = smul.addr %s170, 72
          %s172 = scalar_lea.vmem [#allocation3], %s171
          %s174 = ssub.s32 1152, 1152
          %175 = vsyncadd %s169, %s174
          %s176 = smul.addr %s23, 9
          %s177 = smul.addr %s176, 128
          %s178 = scalar_lea.hbm %s0, %s177
          %s180 = sshll.u32 %s172, 4
          %s181 = int_to_ptr.vmem [resolvable:$true] %s180
          %183 = dma.hbm_to_vmem [thread:$0]  %s178, 1152, %s181, %s169
        $region28: #{tpu_custom_call.1} parent=23 // pred_fallthru
          _
      $region24: #{tpu_custom_call.1} parent=5 // pred_fallthru
        _
      %p184 = scmp.le.s32.totalorder 1, %s16
      %p185 = scmp.lt.s32.totalorder %s16, 3
      %p186 = pnand %p184, %p185
      %p187 = pneg %p186
      // Predicated region
      $region29: #{tpu_custom_call.1} parent=5 // pred_check
        _
      $region30: #{tpu_custom_call.1} parent=5 // pred_check_branch
        %189 = sbr.rel (%p186) target = $region32
      $region31: #{tpu_custom_call.1} parent=5 // pred_region
        %s190 = ssub.s32 %s16, 1
        %s191 = sand.u32 %s41, 1
        %s192 = scalar_lea.sflag [#allocation4], %s191
        %s193 = sand.u32 %s41, 1
        %s194 = smul.addr %s193, 72
        %s195 = scalar_lea.vmem [#allocation3], %s194
        // Predicated region
        $region33: #{tpu_custom_call.1} parent=31 // pred_check
          %p196 = pneg %p54
        $region34: #{tpu_custom_call.1} parent=31 // pred_check_branch
          %198 = sbr.rel (%p196) target = $region36
        $region35: #{tpu_custom_call.1} parent=31 // pred_region
          %199 = dma.done %s192, 1152
        $region36: #{tpu_custom_call.1} parent=31 // pred_fallthru
          _
        // Predicated region
        $region37: #{tpu_custom_call.1} parent=31 // pred_check
          %p200 = pneg %p80
        $region38: #{tpu_custom_call.1} parent=31 // pred_check_branch
          %202 = sbr.rel (%p200) target = $region40
        $region39: #{tpu_custom_call.1} parent=31 // pred_region
          %203 = dma.done [#allocation7], 256
        $region40: #{tpu_custom_call.1} parent=31 // pred_fallthru
          _
        %s204 = sand.u32 %s41, 1
        %s205 = scalar_lea.sflag [#allocation4], %s204
        %s206 = sand.u32 %s41, 1
        %s207 = smul.addr %s206, 72
        %s208 = scalar_lea.vmem [#allocation3], %s207
        %p209 = pneg %p54
        %p210 = pneg %p51
        %p211 = pneg %p80
        %p212 = pneg %p77
        %p213 = pneg %p101
        %p214 = pneg %p98
        %p215 = pneg %p129
        %p216 = pneg %p126
        %s217 = sand.u32 %s116, 1
        %s218 = scalar_lea.sflag [#allocation5], %s217
        %s219 = sand.u32 %s116, 1
        %s220 = smul.addr %s219, 56
        %s221 = scalar_lea.vmem [#allocation8], %s220
        %p222 = scmp.eq.s32.totalorder %s26, 0
        // Predicated region
        $region41: #{tpu_custom_call.1} parent=31 // pred_check
          %p223 = pneg %p222
        $region42: #{tpu_custom_call.1} parent=31 // pred_check_branch
          %225 = sbr.rel (%p223) target = $region44
        $region43: #{tpu_custom_call.1} parent=31 // pred_region
          %v226 = vld [vmem:[%s195] sm:$0xff]
          %v227 = vld [vmem:[%s195 + $0x8] sm:$0xff]
          %v228 = vld [vmem:[%s195 + $0x10] sm:$0xff]
          %v229 = vld [vmem:[%s195 + $0x18] sm:$0xff]
          %v230 = vld [vmem:[%s195 + $0x20] sm:$0xff]
          %v231 = vld [vmem:[%s195 + $0x28] sm:$0xff]
          %v232 = vld [vmem:[%s195 + $0x30] sm:$0xff]
          %v233 = vld [vmem:[%s195 + $0x38] sm:$0xff]
          %v234 = vld [vmem:[%s195 + $0x40] sm:$0xff]
          %235 = vst [vmem:[#allocation2] sm:$0xff] %v226
          %236 = vst [vmem:[#allocation2 + $0x8] sm:$0xff] %v227
          %237 = vst [vmem:[#allocation2 + $0x10] sm:$0xff] %v228
          %238 = vst [vmem:[#allocation2 + $0x18] sm:$0xff] %v229
          %239 = vst [vmem:[#allocation2 + $0x20] sm:$0xff] %v230
          %240 = vst [vmem:[#allocation2 + $0x28] sm:$0xff] %v231
          %241 = vst [vmem:[#allocation2 + $0x30] sm:$0xff] %v232
          %250 = vrot.lane.b32.xlu0 %v226, 127
          %v251 = vpop.permute.xlu0 %250
          %252 = vrot.lane.b32.xlu0 %v227, 127
          %v253 = vpop.permute.xlu0 %252
          %254 = vrot.lane.b32.xlu0 %v228, 127
          %v255 = vpop.permute.xlu0 %254
          %256 = vrot.lane.b32.xlu0 %v229, 127
          %v257 = vpop.permute.xlu0 %256
          %258 = vrot.lane.b32.xlu0 %v230, 127
          %v259 = vpop.permute.xlu0 %258
          %260 = vrot.lane.b32.xlu0 %v231, 127
          %v261 = vpop.permute.xlu0 %260
          %262 = vrot.lane.b32.xlu0 %v232, 127
          %v263 = vpop.permute.xlu0 %262
          %264 = vrot.lane.b32.xlu0 %v233, 127
          %v265 = vpop.permute.xlu0 %264
          %vm266 = vcmask 1039360
          %v267 = vsel %vm266, %v251, %v253
          %v268 = vsel %vm266, %v253, %v255
          %v269 = vsel %vm266, %v255, %v257
          %v270 = vsel %vm266, %v257, %v259
          %v271 = vsel %vm266, %v259, %v261
          %v272 = vsel %vm266, %v261, %v263
          %v273 = vsel %vm266, %v263, %v265
          %281 = vst [vmem:[#allocation2 + $0x38] sm:$0xff] %v267
          %282 = vst [vmem:[#allocation2 + $0x40] sm:$0xff] %v268
          %283 = vst [vmem:[#allocation2 + $0x48] sm:$0xff] %v269
          %284 = vst [vmem:[#allocation2 + $0x50] sm:$0xff] %v270
          %285 = vst [vmem:[#allocation2 + $0x58] sm:$0xff] %v271
          %286 = vst [vmem:[#allocation2 + $0x60] sm:$0xff] %v272
          %287 = vst [vmem:[#allocation2 + $0x68] sm:$0xff] %v273
          %288 = vrot.lane.b32.xlu0 %v226, 126
          %v289 = vpop.permute.xlu0 %288
          %290 = vrot.lane.b32.xlu0 %v227, 126
          %v291 = vpop.permute.xlu0 %290
          %292 = vrot.lane.b32.xlu0 %v228, 126
          %v293 = vpop.permute.xlu0 %292
          %294 = vrot.lane.b32.xlu0 %v229, 126
          %v295 = vpop.permute.xlu0 %294
          %296 = vrot.lane.b32.xlu0 %v230, 126
          %v297 = vpop.permute.xlu0 %296
          %298 = vrot.lane.b32.xlu0 %v231, 126
          %v299 = vpop.permute.xlu0 %298
          %300 = vrot.lane.b32.xlu0 %v232, 126
          %v301 = vpop.permute.xlu0 %300
          %302 = vrot.lane.b32.xlu0 %v233, 126
          %v303 = vpop.permute.xlu0 %302
          %vm304 = vcmask 1031168
          %v305 = vsel %vm304, %v289, %v291
          %v306 = vsel %vm304, %v291, %v293
          %v307 = vsel %vm304, %v293, %v295
          %v308 = vsel %vm304, %v295, %v297
          %v309 = vsel %vm304, %v297, %v299
          %v310 = vsel %vm304, %v299, %v301
          %v311 = vsel %vm304, %v301, %v303
          %319 = vst [vmem:[#allocation2 + $0x70] sm:$0xff] %v305
          %320 = vst [vmem:[#allocation2 + $0x78] sm:$0xff] %v306
          %321 = vst [vmem:[#allocation2 + $0x80] sm:$0xff] %v307
          %322 = vst [vmem:[#allocation2 + $0x88] sm:$0xff] %v308
          %323 = vst [vmem:[#allocation2 + $0x90] sm:$0xff] %v309
          %324 = vst [vmem:[#allocation2 + $0x98] sm:$0xff] %v310
          %325 = vst [vmem:[#allocation2 + $0xa0] sm:$0xff] %v311
          %326 = vrot.lane.b32.xlu0 %v226, 118
          %v327 = vpop.permute.xlu0 %326
          %328 = vrot.lane.b32.xlu0 %v227, 118
          %v329 = vpop.permute.xlu0 %328
          %330 = vrot.lane.b32.xlu0 %v228, 118
          %v331 = vpop.permute.xlu0 %330
          %332 = vrot.lane.b32.xlu0 %v229, 118
          %v333 = vpop.permute.xlu0 %332
          %334 = vrot.lane.b32.xlu0 %v230, 118
          %v335 = vpop.permute.xlu0 %334
          %336 = vrot.lane.b32.xlu0 %v231, 118
          %v337 = vpop.permute.xlu0 %336
          %338 = vrot.lane.b32.xlu0 %v232, 118
          %v339 = vpop.permute.xlu0 %338
          %340 = vrot.lane.b32.xlu0 %v233, 118
          %v341 = vpop.permute.xlu0 %340
          %vm342 = vcmask 965632
          %v343 = vsel %vm342, %v327, %v329
          %v344 = vsel %vm342, %v329, %v331
          %v345 = vsel %vm342, %v331, %v333
          %v346 = vsel %vm342, %v333, %v335
          %v347 = vsel %vm342, %v335, %v337
          %v348 = vsel %vm342, %v337, %v339
          %v349 = vsel %vm342, %v339, %v341
          %357 = vst [vmem:[#allocation2 + $0xa8] sm:$0xff] %v343
          %358 = vst [vmem:[#allocation2 + $0xb0] sm:$0xff] %v344
          %359 = vst [vmem:[#allocation2 + $0xb8] sm:$0xff] %v345
          %360 = vst [vmem:[#allocation2 + $0xc0] sm:$0xff] %v346
          %361 = vst [vmem:[#allocation2 + $0xc8] sm:$0xff] %v347
          %362 = vst [vmem:[#allocation2 + $0xd0] sm:$0xff] %v348
          %363 = vst [vmem:[#allocation2 + $0xd8] sm:$0xff] %v349
          %364 = vrot.lane.b32.xlu0 %v226, 117
          %v365 = vpop.permute.xlu0 %364
          %366 = vrot.lane.b32.xlu0 %v227, 117
          %v367 = vpop.permute.xlu0 %366
          %368 = vrot.lane.b32.xlu0 %v228, 117
          %v369 = vpop.permute.xlu0 %368
          %370 = vrot.lane.b32.xlu0 %v229, 117
          %v371 = vpop.permute.xlu0 %370
          %372 = vrot.lane.b32.xlu0 %v230, 117
          %v373 = vpop.permute.xlu0 %372
          %374 = vrot.lane.b32.xlu0 %v231, 117
          %v375 = vpop.permute.xlu0 %374
          %376 = vrot.lane.b32.xlu0 %v232, 117
          %v377 = vpop.permute.xlu0 %376
          %378 = vrot.lane.b32.xlu0 %v233, 117
          %v379 = vpop.permute.xlu0 %378
          %vm380 = vcmask 957440
          %v381 = vsel %vm380, %v365, %v367
          %v382 = vsel %vm380, %v367, %v369
          %v383 = vsel %vm380, %v369, %v371
          %v384 = vsel %vm380, %v371, %v373
          %v385 = vsel %vm380, %v373, %v375
          %v386 = vsel %vm380, %v375, %v377
          %v387 = vsel %vm380, %v377, %v379
          %395 = vst [vmem:[#allocation2 + $0xe0] sm:$0xff] %v381
          %396 = vst [vmem:[#allocation2 + $0xe8] sm:$0xff] %v382
          %397 = vst [vmem:[#allocation2 + $0xf0] sm:$0xff] %v383
          %398 = vst [vmem:[#allocation2 + $0xf8] sm:$0xff] %v384
          %399 = vst [vmem:[#allocation2 + $0x100] sm:$0xff] %v385
          %400 = vst [vmem:[#allocation2 + $0x108] sm:$0xff] %v386
          %401 = vst [vmem:[#allocation2 + $0x110] sm:$0xff] %v387
          %402 = vrot.lane.b32.xlu0 %v226, 116
          %v403 = vpop.permute.xlu0 %402
          %404 = vrot.lane.b32.xlu0 %v227, 116
          %v405 = vpop.permute.xlu0 %404
          %406 = vrot.lane.b32.xlu0 %v228, 116
          %v407 = vpop.permute.xlu0 %406
          %408 = vrot.lane.b32.xlu0 %v229, 116
          %v409 = vpop.permute.xlu0 %408
          %410 = vrot.lane.b32.xlu0 %v230, 116
          %v411 = vpop.permute.xlu0 %410
          %412 = vrot.lane.b32.xlu0 %v231, 116
          %v413 = vpop.permute.xlu0 %412
          %414 = vrot.lane.b32.xlu0 %v232, 116
          %v415 = vpop.permute.xlu0 %414
          %416 = vrot.lane.b32.xlu0 %v233, 116
          %v417 = vpop.permute.xlu0 %416
          %vm418 = vcmask 949248
          %v419 = vsel %vm418, %v403, %v405
          %v420 = vsel %vm418, %v405, %v407
          %v421 = vsel %vm418, %v407, %v409
          %v422 = vsel %vm418, %v409, %v411
          %v423 = vsel %vm418, %v411, %v413
          %v424 = vsel %vm418, %v413, %v415
          %v425 = vsel %vm418, %v415, %v417
          %433 = vst [vmem:[#allocation2 + $0x118] sm:$0xff] %v419
          %434 = vst [vmem:[#allocation2 + $0x120] sm:$0xff] %v420
          %435 = vst [vmem:[#allocation2 + $0x128] sm:$0xff] %v421
          %436 = vst [vmem:[#allocation2 + $0x130] sm:$0xff] %v422
          %437 = vst [vmem:[#allocation2 + $0x138] sm:$0xff] %v423
          %438 = vst [vmem:[#allocation2 + $0x140] sm:$0xff] %v424
          %439 = vst [vmem:[#allocation2 + $0x148] sm:$0xff] %v425
          %440 = vrot.lane.b32.xlu0 %v226, 108
          %v441 = vpop.permute.xlu0 %440
          %442 = vrot.lane.b32.xlu0 %v227, 108
          %v443 = vpop.permute.xlu0 %442
          %444 = vrot.lane.b32.xlu0 %v228, 108
          %v445 = vpop.permute.xlu0 %444
          %446 = vrot.lane.b32.xlu0 %v229, 108
          %v447 = vpop.permute.xlu0 %446
          %448 = vrot.lane.b32.xlu0 %v230, 108
          %v449 = vpop.permute.xlu0 %448
          %450 = vrot.lane.b32.xlu0 %v231, 108
          %v451 = vpop.permute.xlu0 %450
          %452 = vrot.lane.b32.xlu0 %v232, 108
          %v453 = vpop.permute.xlu0 %452
          %454 = vrot.lane.b32.xlu0 %v233, 108
          %v455 = vpop.permute.xlu0 %454
          %vm456 = vcmask 883712
          %v457 = vsel %vm456, %v441, %v443
          %v458 = vsel %vm456, %v443, %v445
          %v459 = vsel %vm456, %v445, %v447
          %v460 = vsel %vm456, %v447, %v449
          %v461 = vsel %vm456, %v449, %v451
          %v462 = vsel %vm456, %v451, %v453
          %v463 = vsel %vm456, %v453, %v455
          %471 = vst [vmem:[#allocation2 + $0x150] sm:$0xff] %v457
          %472 = vst [vmem:[#allocation2 + $0x158] sm:$0xff] %v458
          %473 = vst [vmem:[#allocation2 + $0x160] sm:$0xff] %v459
          %474 = vst [vmem:[#allocation2 + $0x168] sm:$0xff] %v460
          %475 = vst [vmem:[#allocation2 + $0x170] sm:$0xff] %v461
          %476 = vst [vmem:[#allocation2 + $0x178] sm:$0xff] %v462
          %477 = vst [vmem:[#allocation2 + $0x180] sm:$0xff] %v463
          %478 = vrot.lane.b32.xlu0 %v226, 107
          %v479 = vpop.permute.xlu0 %478
          %480 = vrot.lane.b32.xlu0 %v227, 107
          %v481 = vpop.permute.xlu0 %480
          %482 = vrot.lane.b32.xlu0 %v228, 107
          %v483 = vpop.permute.xlu0 %482
          %484 = vrot.lane.b32.xlu0 %v229, 107
          %v485 = vpop.permute.xlu0 %484
          %486 = vrot.lane.b32.xlu0 %v230, 107
          %v487 = vpop.permute.xlu0 %486
          %488 = vrot.lane.b32.xlu0 %v231, 107
          %v489 = vpop.permute.xlu0 %488
          %490 = vrot.lane.b32.xlu0 %v232, 107
          %v491 = vpop.permute.xlu0 %490
          %492 = vrot.lane.b32.xlu0 %v233, 107
          %v493 = vpop.permute.xlu0 %492
          %vm494 = vcmask 875520
          %v495 = vsel %vm494, %v479, %v481
          %v496 = vsel %vm494, %v481, %v483
          %v497 = vsel %vm494, %v483, %v485
          %v498 = vsel %vm494, %v485, %v487
          %v499 = vsel %vm494, %v487, %v489
          %v500 = vsel %vm494, %v489, %v491
          %v501 = vsel %vm494, %v491, %v493
          %509 = vst [vmem:[#allocation2 + $0x188] sm:$0xff] %v495
          %510 = vst [vmem:[#allocation2 + $0x190] sm:$0xff] %v496
          %511 = vst [vmem:[#allocation2 + $0x198] sm:$0xff] %v497
          %512 = vst [vmem:[#allocation2 + $0x1a0] sm:$0xff] %v498
          %513 = vst [vmem:[#allocation2 + $0x1a8] sm:$0xff] %v499
          %514 = vst [vmem:[#allocation2 + $0x1b0] sm:$0xff] %v500
          %515 = vst [vmem:[#allocation2 + $0x1b8] sm:$0xff] %v501
          %516 = vrot.lane.b32.xlu0 %v226, 106
          %v517 = vpop.permute.xlu0 %516
          %518 = vrot.lane.b32.xlu0 %v227, 106
          %v519 = vpop.permute.xlu0 %518
          %520 = vrot.lane.b32.xlu0 %v228, 106
          %v521 = vpop.permute.xlu0 %520
          %522 = vrot.lane.b32.xlu0 %v229, 106
          %v523 = vpop.permute.xlu0 %522
          %524 = vrot.lane.b32.xlu0 %v230, 106
          %v525 = vpop.permute.xlu0 %524
          %526 = vrot.lane.b32.xlu0 %v231, 106
          %v527 = vpop.permute.xlu0 %526
          %528 = vrot.lane.b32.xlu0 %v232, 106
          %v529 = vpop.permute.xlu0 %528
          %530 = vrot.lane.b32.xlu0 %v233, 106
          %v531 = vpop.permute.xlu0 %530
          %vm532 = vcmask 867328
          %v533 = vsel %vm532, %v517, %v519
          %v534 = vsel %vm532, %v519, %v521
          %v535 = vsel %vm532, %v521, %v523
          %v536 = vsel %vm532, %v523, %v525
          %v537 = vsel %vm532, %v525, %v527
          %v538 = vsel %vm532, %v527, %v529
          %v539 = vsel %vm532, %v529, %v531
          %547 = vst [vmem:[#allocation2 + $0x1c0] sm:$0xff] %v533
          %548 = vst [vmem:[#allocation2 + $0x1c8] sm:$0xff] %v534
          %549 = vst [vmem:[#allocation2 + $0x1d0] sm:$0xff] %v535
          %550 = vst [vmem:[#allocation2 + $0x1d8] sm:$0xff] %v536
          %551 = vst [vmem:[#allocation2 + $0x1e0] sm:$0xff] %v537
          %552 = vst [vmem:[#allocation2 + $0x1e8] sm:$0xff] %v538
          %553 = vst [vmem:[#allocation2 + $0x1f0] sm:$0xff] %v539
          %554 = vrot.lane.b32.xlu0 %v226, 28
          %v555 = vpop.permute.xlu0 %554
          %556 = vrot.lane.b32.xlu0 %v227, 28
          %v557 = vpop.permute.xlu0 %556
          %558 = vrot.lane.b32.xlu0 %v228, 28
          %v559 = vpop.permute.xlu0 %558
          %560 = vrot.lane.b32.xlu0 %v229, 28
          %v561 = vpop.permute.xlu0 %560
          %562 = vrot.lane.b32.xlu0 %v230, 28
          %v563 = vpop.permute.xlu0 %562
          %564 = vrot.lane.b32.xlu0 %v231, 28
          %v565 = vpop.permute.xlu0 %564
          %566 = vrot.lane.b32.xlu0 %v232, 28
          %v567 = vpop.permute.xlu0 %566
          %568 = vrot.lane.b32.xlu0 %v233, 28
          %v569 = vpop.permute.xlu0 %568
          %vm570 = vcmask 228352
          %v571 = vsel %vm570, %v555, %v557
          %v572 = vsel %vm570, %v557, %v559
          %v573 = vsel %vm570, %v559, %v561
          %v574 = vsel %vm570, %v561, %v563
          %v575 = vsel %vm570, %v563, %v565
          %v576 = vsel %vm570, %v565, %v567
          %v577 = vsel %vm570, %v567, %v569
          %585 = vst [vmem:[#allocation2 + $0x1f8] sm:$0xff] %v571
          %586 = vst [vmem:[#allocation2 + $0x200] sm:$0xff] %v572
          %587 = vst [vmem:[#allocation2 + $0x208] sm:$0xff] %v573
          %588 = vst [vmem:[#allocation2 + $0x210] sm:$0xff] %v574
          %589 = vst [vmem:[#allocation2 + $0x218] sm:$0xff] %v575
          %590 = vst [vmem:[#allocation2 + $0x220] sm:$0xff] %v576
          %591 = vst [vmem:[#allocation2 + $0x228] sm:$0xff] %v577
          %592 = vrot.lane.b32.xlu0 %v226, 27
          %v593 = vpop.permute.xlu0 %592
          %594 = vrot.lane.b32.xlu0 %v227, 27
          %v595 = vpop.permute.xlu0 %594
          %596 = vrot.lane.b32.xlu0 %v228, 27
          %v597 = vpop.permute.xlu0 %596
          %598 = vrot.lane.b32.xlu0 %v229, 27
          %v599 = vpop.permute.xlu0 %598
          %600 = vrot.lane.b32.xlu0 %v230, 27
          %v601 = vpop.permute.xlu0 %600
          %602 = vrot.lane.b32.xlu0 %v231, 27
          %v603 = vpop.permute.xlu0 %602
          %604 = vrot.lane.b32.xlu0 %v232, 27
          %v605 = vpop.permute.xlu0 %604
          %606 = vrot.lane.b32.xlu0 %v233, 27
          %v607 = vpop.permute.xlu0 %606
          %vm608 = vcmask 220160
          %v609 = vsel %vm608, %v593, %v595
          %v610 = vsel %vm608, %v595, %v597
          %v611 = vsel %vm608, %v597, %v599
          %v612 = vsel %vm608, %v599, %v601
          %v613 = vsel %vm608, %v601, %v603
          %v614 = vsel %vm608, %v603, %v605
          %v615 = vsel %vm608, %v605, %v607
          %623 = vst [vmem:[#allocation2 + $0x230] sm:$0xff] %v609
          %624 = vst [vmem:[#allocation2 + $0x238] sm:$0xff] %v610
          %625 = vst [vmem:[#allocation2 + $0x240] sm:$0xff] %v611
          %626 = vst [vmem:[#allocation2 + $0x248] sm:$0xff] %v612
          %627 = vst [vmem:[#allocation2 + $0x250] sm:$0xff] %v613
          %628 = vst [vmem:[#allocation2 + $0x258] sm:$0xff] %v614
          %629 = vst [vmem:[#allocation2 + $0x260] sm:$0xff] %v615
          %630 = vrot.lane.b32.xlu0 %v226, 26
          %v631 = vpop.permute.xlu0 %630
          %632 = vrot.lane.b32.xlu0 %v227, 26
          %v633 = vpop.permute.xlu0 %632
          %634 = vrot.lane.b32.xlu0 %v228, 26
          %v635 = vpop.permute.xlu0 %634
          %636 = vrot.lane.b32.xlu0 %v229, 26
          %v637 = vpop.permute.xlu0 %636
          %638 = vrot.lane.b32.xlu0 %v230, 26
          %v639 = vpop.permute.xlu0 %638
          %640 = vrot.lane.b32.xlu0 %v231, 26
          %v641 = vpop.permute.xlu0 %640
          %642 = vrot.lane.b32.xlu0 %v232, 26
          %v643 = vpop.permute.xlu0 %642
          %644 = vrot.lane.b32.xlu0 %v233, 26
          %v645 = vpop.permute.xlu0 %644
          %vm646 = vcmask 211968
          %v647 = vsel %vm646, %v631, %v633
          %v648 = vsel %vm646, %v633, %v635
          %v649 = vsel %vm646, %v635, %v637
          %v650 = vsel %vm646, %v637, %v639
          %v651 = vsel %vm646, %v639, %v641
          %v652 = vsel %vm646, %v641, %v643
          %v653 = vsel %vm646, %v643, %v645
          %661 = vst [vmem:[#allocation2 + $0x268] sm:$0xff] %v647
          %662 = vst [vmem:[#allocation2 + $0x270] sm:$0xff] %v648
          %663 = vst [vmem:[#allocation2 + $0x278] sm:$0xff] %v649
          %664 = vst [vmem:[#allocation2 + $0x280] sm:$0xff] %v650
          %665 = vst [vmem:[#allocation2 + $0x288] sm:$0xff] %v651
          %666 = vst [vmem:[#allocation2 + $0x290] sm:$0xff] %v652
          %667 = vst [vmem:[#allocation2 + $0x298] sm:$0xff] %v653
          %668 = vrot.lane.b32.xlu0 %v226, 18
          %v669 = vpop.permute.xlu0 %668
          %670 = vrot.lane.b32.xlu0 %v227, 18
          %v671 = vpop.permute.xlu0 %670
          %672 = vrot.lane.b32.xlu0 %v228, 18
          %v673 = vpop.permute.xlu0 %672
          %674 = vrot.lane.b32.xlu0 %v229, 18
          %v675 = vpop.permute.xlu0 %674
          %676 = vrot.lane.b32.xlu0 %v230, 18
          %v677 = vpop.permute.xlu0 %676
          %678 = vrot.lane.b32.xlu0 %v231, 18
          %v679 = vpop.permute.xlu0 %678
          %680 = vrot.lane.b32.xlu0 %v232, 18
          %v681 = vpop.permute.xlu0 %680
          %682 = vrot.lane.b32.xlu0 %v233, 18
          %v683 = vpop.permute.xlu0 %682
          %vm684 = vcmask 146432
          %v685 = vsel %vm684, %v669, %v671
          %v686 = vsel %vm684, %v671, %v673
          %v687 = vsel %vm684, %v673, %v675
          %v688 = vsel %vm684, %v675, %v677
          %v689 = vsel %vm684, %v677, %v679
          %v690 = vsel %vm684, %v679, %v681
          %v691 = vsel %vm684, %v681, %v683
          %699 = vst [vmem:[#allocation2 + $0x2a0] sm:$0xff] %v685
          %700 = vst [vmem:[#allocation2 + $0x2a8] sm:$0xff] %v686
          %701 = vst [vmem:[#allocation2 + $0x2b0] sm:$0xff] %v687
          %702 = vst [vmem:[#allocation2 + $0x2b8] sm:$0xff] %v688
          %703 = vst [vmem:[#allocation2 + $0x2c0] sm:$0xff] %v689
          %704 = vst [vmem:[#allocation2 + $0x2c8] sm:$0xff] %v690
          %705 = vst [vmem:[#allocation2 + $0x2d0] sm:$0xff] %v691
          %706 = vrot.lane.b32.xlu0 %v226, 17
          %v707 = vpop.permute.xlu0 %706
          %708 = vrot.lane.b32.xlu0 %v227, 17
          %v709 = vpop.permute.xlu0 %708
          %710 = vrot.lane.b32.xlu0 %v228, 17
          %v711 = vpop.permute.xlu0 %710
          %712 = vrot.lane.b32.xlu0 %v229, 17
          %v713 = vpop.permute.xlu0 %712
          %714 = vrot.lane.b32.xlu0 %v230, 17
          %v715 = vpop.permute.xlu0 %714
          %716 = vrot.lane.b32.xlu0 %v231, 17
          %v717 = vpop.permute.xlu0 %716
          %718 = vrot.lane.b32.xlu0 %v232, 17
          %v719 = vpop.permute.xlu0 %718
          %720 = vrot.lane.b32.xlu0 %v233, 17
          %v721 = vpop.permute.xlu0 %720
          %vm722 = vcmask 138240
          %v723 = vsel %vm722, %v707, %v709
          %v724 = vsel %vm722, %v709, %v711
          %v725 = vsel %vm722, %v711, %v713
          %v726 = vsel %vm722, %v713, %v715
          %v727 = vsel %vm722, %v715, %v717
          %v728 = vsel %vm722, %v717, %v719
          %v729 = vsel %vm722, %v719, %v721
          %737 = vst [vmem:[#allocation2 + $0x2d8] sm:$0xff] %v723
          %738 = vst [vmem:[#allocation2 + $0x2e0] sm:$0xff] %v724
          %739 = vst [vmem:[#allocation2 + $0x2e8] sm:$0xff] %v725
          %740 = vst [vmem:[#allocation2 + $0x2f0] sm:$0xff] %v726
          %741 = vst [vmem:[#allocation2 + $0x2f8] sm:$0xff] %v727
          %742 = vst [vmem:[#allocation2 + $0x300] sm:$0xff] %v728
          %743 = vst [vmem:[#allocation2 + $0x308] sm:$0xff] %v729
          %744 = vrot.lane.b32.xlu0 %v226, 16
          %v745 = vpop.permute.xlu0 %744
          %746 = vrot.lane.b32.xlu0 %v227, 16
          %v747 = vpop.permute.xlu0 %746
          %748 = vrot.lane.b32.xlu0 %v228, 16
          %v749 = vpop.permute.xlu0 %748
          %750 = vrot.lane.b32.xlu0 %v229, 16
          %v751 = vpop.permute.xlu0 %750
          %752 = vrot.lane.b32.xlu0 %v230, 16
          %v753 = vpop.permute.xlu0 %752
          %754 = vrot.lane.b32.xlu0 %v231, 16
          %v755 = vpop.permute.xlu0 %754
          %756 = vrot.lane.b32.xlu0 %v232, 16
          %v757 = vpop.permute.xlu0 %756
          %758 = vrot.lane.b32.xlu0 %v233, 16
          %v759 = vpop.permute.xlu0 %758
          %vm760 = vcmask 130048
          %v761 = vsel %vm760, %v745, %v747
          %v762 = vsel %vm760, %v747, %v749
          %v763 = vsel %vm760, %v749, %v751
          %v764 = vsel %vm760, %v751, %v753
          %v765 = vsel %vm760, %v753, %v755
          %v766 = vsel %vm760, %v755, %v757
          %v767 = vsel %vm760, %v757, %v759
          %775 = vst [vmem:[#allocation2 + $0x310] sm:$0xff] %v761
          %776 = vst [vmem:[#allocation2 + $0x318] sm:$0xff] %v762
          %777 = vst [vmem:[#allocation2 + $0x320] sm:$0xff] %v763
          %778 = vst [vmem:[#allocation2 + $0x328] sm:$0xff] %v764
          %779 = vst [vmem:[#allocation2 + $0x330] sm:$0xff] %v765
          %780 = vst [vmem:[#allocation2 + $0x338] sm:$0xff] %v766
          %781 = vst [vmem:[#allocation2 + $0x340] sm:$0xff] %v767
          %782 = vrot.lane.b32.xlu0 %v226, 8
          %v783 = vpop.permute.xlu0 %782
          %784 = vrot.lane.b32.xlu0 %v227, 8
          %v785 = vpop.permute.xlu0 %784
          %786 = vrot.lane.b32.xlu0 %v228, 8
          %v787 = vpop.permute.xlu0 %786
          %788 = vrot.lane.b32.xlu0 %v229, 8
          %v789 = vpop.permute.xlu0 %788
          %790 = vrot.lane.b32.xlu0 %v230, 8
          %v791 = vpop.permute.xlu0 %790
          %792 = vrot.lane.b32.xlu0 %v231, 8
          %v793 = vpop.permute.xlu0 %792
          %794 = vrot.lane.b32.xlu0 %v232, 8
          %v795 = vpop.permute.xlu0 %794
          %796 = vrot.lane.b32.xlu0 %v233, 8
          %v797 = vpop.permute.xlu0 %796
          %vm798 = vcmask 64512
          %v799 = vsel %vm798, %v783, %v785
          %v800 = vsel %vm798, %v785, %v787
          %v801 = vsel %vm798, %v787, %v789
          %v802 = vsel %vm798, %v789, %v791
          %v803 = vsel %vm798, %v791, %v793
          %v804 = vsel %vm798, %v793, %v795
          %v805 = vsel %vm798, %v795, %v797
          %813 = vst [vmem:[#allocation2 + $0x348] sm:$0xff] %v799
          %814 = vst [vmem:[#allocation2 + $0x350] sm:$0xff] %v800
          %815 = vst [vmem:[#allocation2 + $0x358] sm:$0xff] %v801
          %816 = vst [vmem:[#allocation2 + $0x360] sm:$0xff] %v802
          %817 = vst [vmem:[#allocation2 + $0x368] sm:$0xff] %v803
          %818 = vst [vmem:[#allocation2 + $0x370] sm:$0xff] %v804
          %819 = vst [vmem:[#allocation2 + $0x378] sm:$0xff] %v805
          %820 = vrot.lane.b32.xlu0 %v226, 7
          %v821 = vpop.permute.xlu0 %820
          %822 = vrot.lane.b32.xlu0 %v227, 7
          %v823 = vpop.permute.xlu0 %822
          %824 = vrot.lane.b32.xlu0 %v228, 7
          %v825 = vpop.permute.xlu0 %824
          %826 = vrot.lane.b32.xlu0 %v229, 7
          %v827 = vpop.permute.xlu0 %826
          %828 = vrot.lane.b32.xlu0 %v230, 7
          %v829 = vpop.permute.xlu0 %828
          %830 = vrot.lane.b32.xlu0 %v231, 7
          %v831 = vpop.permute.xlu0 %830
          %832 = vrot.lane.b32.xlu0 %v232, 7
          %v833 = vpop.permute.xlu0 %832
          %834 = vrot.lane.b32.xlu0 %v233, 7
          %v835 = vpop.permute.xlu0 %834
          %vm836 = vcmask 56320
          %v837 = vsel %vm836, %v821, %v823
          %v838 = vsel %vm836, %v823, %v825
          %v839 = vsel %vm836, %v825, %v827
          %v840 = vsel %vm836, %v827, %v829
          %v841 = vsel %vm836, %v829, %v831
          %v842 = vsel %vm836, %v831, %v833
          %v843 = vsel %vm836, %v833, %v835
          %851 = vst [vmem:[#allocation2 + $0x380] sm:$0xff] %v837
          %852 = vst [vmem:[#allocation2 + $0x388] sm:$0xff] %v838
          %853 = vst [vmem:[#allocation2 + $0x390] sm:$0xff] %v839
          %854 = vst [vmem:[#allocation2 + $0x398] sm:$0xff] %v840
          %855 = vst [vmem:[#allocation2 + $0x3a0] sm:$0xff] %v841
          %856 = vst [vmem:[#allocation2 + $0x3a8] sm:$0xff] %v842
          %857 = vst [vmem:[#allocation2 + $0x3b0] sm:$0xff] %v843
          %858 = vrot.lane.b32.xlu0 %v226, 6
          %v859 = vpop.permute.xlu0 %858
          %860 = vrot.lane.b32.xlu0 %v227, 6
          %v861 = vpop.permute.xlu0 %860
          %862 = vrot.lane.b32.xlu0 %v228, 6
          %v863 = vpop.permute.xlu0 %862
          %864 = vrot.lane.b32.xlu0 %v229, 6
          %v865 = vpop.permute.xlu0 %864
          %866 = vrot.lane.b32.xlu0 %v230, 6
          %v867 = vpop.permute.xlu0 %866
          %868 = vrot.lane.b32.xlu0 %v231, 6
          %v869 = vpop.permute.xlu0 %868
          %870 = vrot.lane.b32.xlu0 %v232, 6
          %v871 = vpop.permute.xlu0 %870
          %872 = vrot.lane.b32.xlu0 %v233, 6
          %v873 = vpop.permute.xlu0 %872
          %vm874 = vcmask 48128
          %v875 = vsel %vm874, %v859, %v861
          %v876 = vsel %vm874, %v861, %v863
          %v877 = vsel %vm874, %v863, %v865
          %v878 = vsel %vm874, %v865, %v867
          %v879 = vsel %vm874, %v867, %v869
          %v880 = vsel %vm874, %v869, %v871
          %v881 = vsel %vm874, %v871, %v873
          %889 = vst [vmem:[#allocation2 + $0x3b8] sm:$0xff] %v875
          %890 = vst [vmem:[#allocation2 + $0x3c0] sm:$0xff] %v876
          %891 = vst [vmem:[#allocation2 + $0x3c8] sm:$0xff] %v877
          %892 = vst [vmem:[#allocation2 + $0x3d0] sm:$0xff] %v878
          %893 = vst [vmem:[#allocation2 + $0x3d8] sm:$0xff] %v879
          %894 = vst [vmem:[#allocation2 + $0x3e0] sm:$0xff] %v880
          %895 = vst [vmem:[#allocation2 + $0x3e8] sm:$0xff] %v881
          %897 = vrot.lane.b32.xlu0 %v227, 56
          %v898 = vpop.permute.xlu0 %897
          %899 = vrot.lane.b32.xlu0 %v228, 56
          %v900 = vpop.permute.xlu0 %899
          %901 = vrot.lane.b32.xlu0 %v229, 56
          %v902 = vpop.permute.xlu0 %901
          %903 = vrot.lane.b32.xlu0 %v230, 56
          %v904 = vpop.permute.xlu0 %903
          %905 = vrot.lane.b32.xlu0 %v231, 56
          %v906 = vpop.permute.xlu0 %905
          %907 = vrot.lane.b32.xlu0 %v232, 56
          %v908 = vpop.permute.xlu0 %907
          %909 = vrot.lane.b32.xlu0 %v233, 56
          %v910 = vpop.permute.xlu0 %909
          %911 = vrot.lane.b32.xlu0 %v234, 56
          %v912 = vpop.permute.xlu0 %911
          %vm913 = vcmask 457728
          %v914 = vsel %vm913, %v898, %v900
          %v915 = vsel %vm913, %v900, %v902
          %v916 = vsel %vm913, %v902, %v904
          %v917 = vsel %vm913, %v904, %v906
          %v918 = vsel %vm913, %v906, %v908
          %v919 = vsel %vm913, %v908, %v910
          %v920 = vsel %vm913, %v910, %v912
          %928 = vst [vmem:[#allocation2 + $0x3f0] sm:$0xff] %v914
          %929 = vst [vmem:[#allocation2 + $0x3f8] sm:$0xff] %v915
          %930 = vst [vmem:[#allocation2 + $0x400] sm:$0xff] %v916
          %931 = vst [vmem:[#allocation2 + $0x408] sm:$0xff] %v917
          %932 = vst [vmem:[#allocation2 + $0x410] sm:$0xff] %v918
          %933 = vst [vmem:[#allocation2 + $0x418] sm:$0xff] %v919
          %934 = vst [vmem:[#allocation2 + $0x420] sm:$0xff] %v920
          %935 = vrot.lane.b32.xlu0 %v227, 55
          %v936 = vpop.permute.xlu0 %935
          %937 = vrot.lane.b32.xlu0 %v228, 55
          %v938 = vpop.permute.xlu0 %937
          %939 = vrot.lane.b32.xlu0 %v229, 55
          %v940 = vpop.permute.xlu0 %939
          %941 = vrot.lane.b32.xlu0 %v230, 55
          %v942 = vpop.permute.xlu0 %941
          %943 = vrot.lane.b32.xlu0 %v231, 55
          %v944 = vpop.permute.xlu0 %943
          %945 = vrot.lane.b32.xlu0 %v232, 55
          %v946 = vpop.permute.xlu0 %945
          %947 = vrot.lane.b32.xlu0 %v233, 55
          %v948 = vpop.permute.xlu0 %947
          %949 = vrot.lane.b32.xlu0 %v234, 55
          %v950 = vpop.permute.xlu0 %949
          %vm951 = vcmask 449536
          %v952 = vsel %vm951, %v936, %v938
          %v953 = vsel %vm951, %v938, %v940
          %v954 = vsel %vm951, %v940, %v942
          %v955 = vsel %vm951, %v942, %v944
          %v956 = vsel %vm951, %v944, %v946
          %v957 = vsel %vm951, %v946, %v948
          %v958 = vsel %vm951, %v948, %v950
          %966 = vst [vmem:[#allocation2 + $0x428] sm:$0xff] %v952
          %967 = vst [vmem:[#allocation2 + $0x430] sm:$0xff] %v953
          %968 = vst [vmem:[#allocation2 + $0x438] sm:$0xff] %v954
          %969 = vst [vmem:[#allocation2 + $0x440] sm:$0xff] %v955
          %970 = vst [vmem:[#allocation2 + $0x448] sm:$0xff] %v956
          %971 = vst [vmem:[#allocation2 + $0x450] sm:$0xff] %v957
          %972 = vst [vmem:[#allocation2 + $0x458] sm:$0xff] %v958
          %973 = vrot.lane.b32.xlu0 %v227, 54
          %v974 = vpop.permute.xlu0 %973
          %975 = vrot.lane.b32.xlu0 %v228, 54
          %v976 = vpop.permute.xlu0 %975
          %977 = vrot.lane.b32.xlu0 %v229, 54
          %v978 = vpop.permute.xlu0 %977
          %979 = vrot.lane.b32.xlu0 %v230, 54
          %v980 = vpop.permute.xlu0 %979
          %981 = vrot.lane.b32.xlu0 %v231, 54
          %v982 = vpop.permute.xlu0 %981
          %983 = vrot.lane.b32.xlu0 %v232, 54
          %v984 = vpop.permute.xlu0 %983
          %985 = vrot.lane.b32.xlu0 %v233, 54
          %v986 = vpop.permute.xlu0 %985
          %987 = vrot.lane.b32.xlu0 %v234, 54
          %v988 = vpop.permute.xlu0 %987
          %vm989 = vcmask 441344
          %v990 = vsel %vm989, %v974, %v976
          %v991 = vsel %vm989, %v976, %v978
          %v992 = vsel %vm989, %v978, %v980
          %v993 = vsel %vm989, %v980, %v982
          %v994 = vsel %vm989, %v982, %v984
          %v995 = vsel %vm989, %v984, %v986
          %v996 = vsel %vm989, %v986, %v988
          %1004 = vst [vmem:[#allocation2 + $0x460] sm:$0xff] %v990
          %1005 = vst [vmem:[#allocation2 + $0x468] sm:$0xff] %v991
          %1006 = vst [vmem:[#allocation2 + $0x470] sm:$0xff] %v992
          %1007 = vst [vmem:[#allocation2 + $0x478] sm:$0xff] %v993
          %1008 = vst [vmem:[#allocation2 + $0x480] sm:$0xff] %v994
          %1009 = vst [vmem:[#allocation2 + $0x488] sm:$0xff] %v995
          %1010 = vst [vmem:[#allocation2 + $0x490] sm:$0xff] %v996
          %1011 = vrot.lane.b32.xlu0 %v227, 46
          %v1012 = vpop.permute.xlu0 %1011
          %1013 = vrot.lane.b32.xlu0 %v228, 46
          %v1014 = vpop.permute.xlu0 %1013
          %1015 = vrot.lane.b32.xlu0 %v229, 46
          %v1016 = vpop.permute.xlu0 %1015
          %1017 = vrot.lane.b32.xlu0 %v230, 46
          %v1018 = vpop.permute.xlu0 %1017
          %1019 = vrot.lane.b32.xlu0 %v231, 46
          %v1020 = vpop.permute.xlu0 %1019
          %1021 = vrot.lane.b32.xlu0 %v232, 46
          %v1022 = vpop.permute.xlu0 %1021
          %1023 = vrot.lane.b32.xlu0 %v233, 46
          %v1024 = vpop.permute.xlu0 %1023
          %1025 = vrot.lane.b32.xlu0 %v234, 46
          %v1026 = vpop.permute.xlu0 %1025
          %vm1027 = vcmask 375808
          %v1028 = vsel %vm1027, %v1012, %v1014
          %v1029 = vsel %vm1027, %v1014, %v1016
          %v1030 = vsel %vm1027, %v1016, %v1018
          %v1031 = vsel %vm1027, %v1018, %v1020
          %v1032 = vsel %vm1027, %v1020, %v1022
          %v1033 = vsel %vm1027, %v1022, %v1024
          %v1034 = vsel %vm1027, %v1024, %v1026
          %1042 = vst [vmem:[#allocation2 + $0x498] sm:$0xff] %v1028
          %1043 = vst [vmem:[#allocation2 + $0x4a0] sm:$0xff] %v1029
          %1044 = vst [vmem:[#allocation2 + $0x4a8] sm:$0xff] %v1030
          %1045 = vst [vmem:[#allocation2 + $0x4b0] sm:$0xff] %v1031
          %1046 = vst [vmem:[#allocation2 + $0x4b8] sm:$0xff] %v1032
          %1047 = vst [vmem:[#allocation2 + $0x4c0] sm:$0xff] %v1033
          %1048 = vst [vmem:[#allocation2 + $0x4c8] sm:$0xff] %v1034
          %1049 = vrot.lane.b32.xlu0 %v227, 45
          %v1050 = vpop.permute.xlu0 %1049
          %1051 = vrot.lane.b32.xlu0 %v228, 45
          %v1052 = vpop.permute.xlu0 %1051
          %1053 = vrot.lane.b32.xlu0 %v229, 45
          %v1054 = vpop.permute.xlu0 %1053
          %1055 = vrot.lane.b32.xlu0 %v230, 45
          %v1056 = vpop.permute.xlu0 %1055
          %1057 = vrot.lane.b32.xlu0 %v231, 45
          %v1058 = vpop.permute.xlu0 %1057
          %1059 = vrot.lane.b32.xlu0 %v232, 45
          %v1060 = vpop.permute.xlu0 %1059
          %1061 = vrot.lane.b32.xlu0 %v233, 45
          %v1062 = vpop.permute.xlu0 %1061
          %1063 = vrot.lane.b32.xlu0 %v234, 45
          %v1064 = vpop.permute.xlu0 %1063
          %vm1065 = vcmask 367616
          %v1066 = vsel %vm1065, %v1050, %v1052
          %v1067 = vsel %vm1065, %v1052, %v1054
          %v1068 = vsel %vm1065, %v1054, %v1056
          %v1069 = vsel %vm1065, %v1056, %v1058
          %v1070 = vsel %vm1065, %v1058, %v1060
          %v1071 = vsel %vm1065, %v1060, %v1062
          %v1072 = vsel %vm1065, %v1062, %v1064
          %1080 = vst [vmem:[#allocation2 + $0x4d0] sm:$0xff] %v1066
          %1081 = vst [vmem:[#allocation2 + $0x4d8] sm:$0xff] %v1067
          %1082 = vst [vmem:[#allocation2 + $0x4e0] sm:$0xff] %v1068
          %1083 = vst [vmem:[#allocation2 + $0x4e8] sm:$0xff] %v1069
          %1084 = vst [vmem:[#allocation2 + $0x4f0] sm:$0xff] %v1070
          %1085 = vst [vmem:[#allocation2 + $0x4f8] sm:$0xff] %v1071
          %1086 = vst [vmem:[#allocation2 + $0x500] sm:$0xff] %v1072
          %1087 = vrot.lane.b32.xlu0 %v227, 44
          %v1088 = vpop.permute.xlu0 %1087
          %1089 = vrot.lane.b32.xlu0 %v228, 44
          %v1090 = vpop.permute.xlu0 %1089
          %1091 = vrot.lane.b32.xlu0 %v229, 44
          %v1092 = vpop.permute.xlu0 %1091
          %1093 = vrot.lane.b32.xlu0 %v230, 44
          %v1094 = vpop.permute.xlu0 %1093
          %1095 = vrot.lane.b32.xlu0 %v231, 44
          %v1096 = vpop.permute.xlu0 %1095
          %1097 = vrot.lane.b32.xlu0 %v232, 44
          %v1098 = vpop.permute.xlu0 %1097
          %1099 = vrot.lane.b32.xlu0 %v233, 44
          %v1100 = vpop.permute.xlu0 %1099
          %1101 = vrot.lane.b32.xlu0 %v234, 44
          %v1102 = vpop.permute.xlu0 %1101
          %vm1103 = vcmask 359424
          %v1104 = vsel %vm1103, %v1088, %v1090
          %v1105 = vsel %vm1103, %v1090, %v1092
          %v1106 = vsel %vm1103, %v1092, %v1094
          %v1107 = vsel %vm1103, %v1094, %v1096
          %v1108 = vsel %vm1103, %v1096, %v1098
          %v1109 = vsel %vm1103, %v1098, %v1100
          %v1110 = vsel %vm1103, %v1100, %v1102
          %1118 = vst [vmem:[#allocation2 + $0x508] sm:$0xff] %v1104
          %1119 = vst [vmem:[#allocation2 + $0x510] sm:$0xff] %v1105
          %1120 = vst [vmem:[#allocation2 + $0x518] sm:$0xff] %v1106
          %1121 = vst [vmem:[#allocation2 + $0x520] sm:$0xff] %v1107
          %1122 = vst [vmem:[#allocation2 + $0x528] sm:$0xff] %v1108
          %1123 = vst [vmem:[#allocation2 + $0x530] sm:$0xff] %v1109
          %1124 = vst [vmem:[#allocation2 + $0x538] sm:$0xff] %v1110
          %1125 = vrot.lane.b32.xlu0 %v227, 36
          %v1126 = vpop.permute.xlu0 %1125
          %1127 = vrot.lane.b32.xlu0 %v228, 36
          %v1128 = vpop.permute.xlu0 %1127
          %1129 = vrot.lane.b32.xlu0 %v229, 36
          %v1130 = vpop.permute.xlu0 %1129
          %1131 = vrot.lane.b32.xlu0 %v230, 36
          %v1132 = vpop.permute.xlu0 %1131
          %1133 = vrot.lane.b32.xlu0 %v231, 36
          %v1134 = vpop.permute.xlu0 %1133
          %1135 = vrot.lane.b32.xlu0 %v232, 36
          %v1136 = vpop.permute.xlu0 %1135
          %1137 = vrot.lane.b32.xlu0 %v233, 36
          %v1138 = vpop.permute.xlu0 %1137
          %1139 = vrot.lane.b32.xlu0 %v234, 36
          %v1140 = vpop.permute.xlu0 %1139
          %vm1141 = vcmask 293888
          %v1142 = vsel %vm1141, %v1126, %v1128
          %v1143 = vsel %vm1141, %v1128, %v1130
          %v1144 = vsel %vm1141, %v1130, %v1132
          %v1145 = vsel %vm1141, %v1132, %v1134
          %v1146 = vsel %vm1141, %v1134, %v1136
          %v1147 = vsel %vm1141, %v1136, %v1138
          %v1148 = vsel %vm1141, %v1138, %v1140
          %1156 = vst [vmem:[#allocation2 + $0x540] sm:$0xff] %v1142
          %1157 = vst [vmem:[#allocation2 + $0x548] sm:$0xff] %v1143
          %1158 = vst [vmem:[#allocation2 + $0x550] sm:$0xff] %v1144
          %1159 = vst [vmem:[#allocation2 + $0x558] sm:$0xff] %v1145
          %1160 = vst [vmem:[#allocation2 + $0x560] sm:$0xff] %v1146
          %1161 = vst [vmem:[#allocation2 + $0x568] sm:$0xff] %v1147
          %1162 = vst [vmem:[#allocation2 + $0x570] sm:$0xff] %v1148
          %1163 = vrot.lane.b32.xlu0 %v227, 35
          %v1164 = vpop.permute.xlu0 %1163
          %1165 = vrot.lane.b32.xlu0 %v228, 35
          %v1166 = vpop.permute.xlu0 %1165
          %1167 = vrot.lane.b32.xlu0 %v229, 35
          %v1168 = vpop.permute.xlu0 %1167
          %1169 = vrot.lane.b32.xlu0 %v230, 35
          %v1170 = vpop.permute.xlu0 %1169
          %1171 = vrot.lane.b32.xlu0 %v231, 35
          %v1172 = vpop.permute.xlu0 %1171
          %1173 = vrot.lane.b32.xlu0 %v232, 35
          %v1174 = vpop.permute.xlu0 %1173
          %1175 = vrot.lane.b32.xlu0 %v233, 35
          %v1176 = vpop.permute.xlu0 %1175
          %1177 = vrot.lane.b32.xlu0 %v234, 35
          %v1178 = vpop.permute.xlu0 %1177
          %vm1179 = vcmask 285696
          %v1180 = vsel %vm1179, %v1164, %v1166
          %v1181 = vsel %vm1179, %v1166, %v1168
          %v1182 = vsel %vm1179, %v1168, %v1170
          %v1183 = vsel %vm1179, %v1170, %v1172
          %v1184 = vsel %vm1179, %v1172, %v1174
          %v1185 = vsel %vm1179, %v1174, %v1176
          %v1186 = vsel %vm1179, %v1176, %v1178
          %1194 = vst [vmem:[#allocation2 + $0x578] sm:$0xff] %v1180
          %1195 = vst [vmem:[#allocation2 + $0x580] sm:$0xff] %v1181
          %1196 = vst [vmem:[#allocation2 + $0x588] sm:$0xff] %v1182
          %1197 = vst [vmem:[#allocation2 + $0x590] sm:$0xff] %v1183
          %1198 = vst [vmem:[#allocation2 + $0x598] sm:$0xff] %v1184
          %1199 = vst [vmem:[#allocation2 + $0x5a0] sm:$0xff] %v1185
          %1200 = vst [vmem:[#allocation2 + $0x5a8] sm:$0xff] %v1186
          %1201 = vrot.lane.b32.xlu0 %v227, 34
          %v1202 = vpop.permute.xlu0 %1201
          %1203 = vrot.lane.b32.xlu0 %v228, 34
          %v1204 = vpop.permute.xlu0 %1203
          %1205 = vrot.lane.b32.xlu0 %v229, 34
          %v1206 = vpop.permute.xlu0 %1205
          %1207 = vrot.lane.b32.xlu0 %v230, 34
          %v1208 = vpop.permute.xlu0 %1207
          %1209 = vrot.lane.b32.xlu0 %v231, 34
          %v1210 = vpop.permute.xlu0 %1209
          %1211 = vrot.lane.b32.xlu0 %v232, 34
          %v1212 = vpop.permute.xlu0 %1211
          %1213 = vrot.lane.b32.xlu0 %v233, 34
          %v1214 = vpop.permute.xlu0 %1213
          %1215 = vrot.lane.b32.xlu0 %v234, 34
          %v1216 = vpop.permute.xlu0 %1215
          %vm1217 = vcmask 277504
          %v1218 = vsel %vm1217, %v1202, %v1204
          %v1219 = vsel %vm1217, %v1204, %v1206
          %v1220 = vsel %vm1217, %v1206, %v1208
          %v1221 = vsel %vm1217, %v1208, %v1210
          %v1222 = vsel %vm1217, %v1210, %v1212
          %v1223 = vsel %vm1217, %v1212, %v1214
          %v1224 = vsel %vm1217, %v1214, %v1216
          %1232 = vst [vmem:[#allocation2 + $0x5b0] sm:$0xff] %v1218
          %1233 = vst [vmem:[#allocation2 + $0x5b8] sm:$0xff] %v1219
          %1234 = vst [vmem:[#allocation2 + $0x5c0] sm:$0xff] %v1220
          %1235 = vst [vmem:[#allocation2 + $0x5c8] sm:$0xff] %v1221
          %1236 = vst [vmem:[#allocation2 + $0x5d0] sm:$0xff] %v1222
          %1237 = vst [vmem:[#allocation2 + $0x5d8] sm:$0xff] %v1223
          %1238 = vst [vmem:[#allocation2 + $0x5e0] sm:$0xff] %v1224
        $region44: #{tpu_custom_call.1} parent=31 // pred_fallthru
          _
        %v1239 = vld [vmem:[#allocation6] sm:$0xff]
        %v1240 = vld [vmem:[#allocation6 + $0x8] sm:$0xff]
        %v1241 = vld [vmem:[#allocation2] sm:$0xff]
        %v1242 = vld [vmem:[#allocation2 + $0x8] sm:$0xff]
        %v1243 = vld [vmem:[#allocation2 + $0x10] sm:$0xff]
        %v1244 = vld [vmem:[#allocation2 + $0x18] sm:$0xff]
        %v1245 = vld [vmem:[#allocation2 + $0x20] sm:$0xff]
        %v1246 = vld [vmem:[#allocation2 + $0x28] sm:$0xff]
        %v1247 = vld [vmem:[#allocation2 + $0x30] sm:$0xff]
        %v1248 = vld [vmem:[#allocation2 + $0x38] sm:$0xff]
        %v1249 = vld [vmem:[#allocation2 + $0x40] sm:$0xff]
        %v1250 = vld [vmem:[#allocation2 + $0x48] sm:$0xff]
        %v1251 = vld [vmem:[#allocation2 + $0x50] sm:$0xff]
        %v1252 = vld [vmem:[#allocation2 + $0x58] sm:$0xff]
        %v1253 = vld [vmem:[#allocation2 + $0x60] sm:$0xff]
        %v1254 = vld [vmem:[#allocation2 + $0x68] sm:$0xff]
        %v1255 = vld [vmem:[#allocation2 + $0x70] sm:$0xff]
        %v1256 = vld [vmem:[#allocation2 + $0x78] sm:$0xff]
        %v1257 = vld [vmem:[#allocation2 + $0x80] sm:$0xff]
        %v1258 = vld [vmem:[#allocation2 + $0x88] sm:$0xff]
        %v1259 = vld [vmem:[#allocation2 + $0x90] sm:$0xff]
        %v1260 = vld [vmem:[#allocation2 + $0x98] sm:$0xff]
        %v1261 = vld [vmem:[#allocation2 + $0xa0] sm:$0xff]
        %v1262 = vld [vmem:[#allocation2 + $0xa8] sm:$0xff]
        %v1263 = vld [vmem:[#allocation2 + $0xb0] sm:$0xff]
        %v1264 = vld [vmem:[#allocation2 + $0xb8] sm:$0xff]
        %v1265 = vld [vmem:[#allocation2 + $0xc0] sm:$0xff]
        %v1266 = vld [vmem:[#allocation2 + $0xc8] sm:$0xff]
        %v1267 = vld [vmem:[#allocation2 + $0xd0] sm:$0xff]
        %v1268 = vld [vmem:[#allocation2 + $0xd8] sm:$0xff]
        %v1269 = vld [vmem:[#allocation2 + $0xe0] sm:$0xff]
        %v1270 = vld [vmem:[#allocation2 + $0xe8] sm:$0xff]
        %v1271 = vld [vmem:[#allocation2 + $0xf0] sm:$0xff]
        %v1272 = vld [vmem:[#allocation2 + $0xf8] sm:$0xff]
        %v1273 = vld [vmem:[#allocation2 + $0x100] sm:$0xff]
        %v1274 = vld [vmem:[#allocation2 + $0x108] sm:$0xff]
        %v1275 = vld [vmem:[#allocation2 + $0x110] sm:$0xff]
        %v1276 = vld [vmem:[#allocation2 + $0x118] sm:$0xff]
        %v1277 = vld [vmem:[#allocation2 + $0x120] sm:$0xff]
        %v1278 = vld [vmem:[#allocation2 + $0x128] sm:$0xff]
        %v1279 = vld [vmem:[#allocation2 + $0x130] sm:$0xff]
        %v1280 = vld [vmem:[#allocation2 + $0x138] sm:$0xff]
        %v1281 = vld [vmem:[#allocation2 + $0x140] sm:$0xff]
        %v1282 = vld [vmem:[#allocation2 + $0x148] sm:$0xff]
        %v1283 = vld [vmem:[#allocation2 + $0x150] sm:$0xff]
        %v1284 = vld [vmem:[#allocation2 + $0x158] sm:$0xff]
        %v1285 = vld [vmem:[#allocation2 + $0x160] sm:$0xff]
        %v1286 = vld [vmem:[#allocation2 + $0x168] sm:$0xff]
        %v1287 = vld [vmem:[#allocation2 + $0x170] sm:$0xff]
        %v1288 = vld [vmem:[#allocation2 + $0x178] sm:$0xff]
        %v1289 = vld [vmem:[#allocation2 + $0x180] sm:$0xff]
        %v1290 = vld [vmem:[#allocation2 + $0x188] sm:$0xff]
        %v1291 = vld [vmem:[#allocation2 + $0x190] sm:$0xff]
        %v1292 = vld [vmem:[#allocation2 + $0x198] sm:$0xff]
        %v1293 = vld [vmem:[#allocation2 + $0x1a0] sm:$0xff]
        %v1294 = vld [vmem:[#allocation2 + $0x1a8] sm:$0xff]
        %v1295 = vld [vmem:[#allocation2 + $0x1b0] sm:$0xff]
        %v1296 = vld [vmem:[#allocation2 + $0x1b8] sm:$0xff]
        %v1297 = vld [vmem:[#allocation2 + $0x1c0] sm:$0xff]
        %v1298 = vld [vmem:[#allocation2 + $0x1c8] sm:$0xff]
        %v1299 = vld [vmem:[#allocation2 + $0x1d0] sm:$0xff]
        %v1300 = vld [vmem:[#allocation2 + $0x1d8] sm:$0xff]
        %v1301 = vld [vmem:[#allocation2 + $0x1e0] sm:$0xff]
        %v1302 = vld [vmem:[#allocation2 + $0x1e8] sm:$0xff]
        %v1303 = vld [vmem:[#allocation2 + $0x1f0] sm:$0xff]
        %v1304 = vld [vmem:[#allocation2 + $0x1f8] sm:$0xff]
        %v1305 = vld [vmem:[#allocation2 + $0x200] sm:$0xff]
        %v1306 = vld [vmem:[#allocation2 + $0x208] sm:$0xff]
        %v1307 = vld [vmem:[#allocation2 + $0x210] sm:$0xff]
        %v1308 = vld [vmem:[#allocation2 + $0x218] sm:$0xff]
        %v1309 = vld [vmem:[#allocation2 + $0x220] sm:$0xff]
        %v1310 = vld [vmem:[#allocation2 + $0x228] sm:$0xff]
        %v1311 = vld [vmem:[#allocation2 + $0x230] sm:$0xff]
        %v1312 = vld [vmem:[#allocation2 + $0x238] sm:$0xff]
        %v1313 = vld [vmem:[#allocation2 + $0x240] sm:$0xff]
        %v1314 = vld [vmem:[#allocation2 + $0x248] sm:$0xff]
        %v1315 = vld [vmem:[#allocation2 + $0x250] sm:$0xff]
        %v1316 = vld [vmem:[#allocation2 + $0x258] sm:$0xff]
        %v1317 = vld [vmem:[#allocation2 + $0x260] sm:$0xff]
        %v1318 = vld [vmem:[#allocation2 + $0x268] sm:$0xff]
        %v1319 = vld [vmem:[#allocation2 + $0x270] sm:$0xff]
        %v1320 = vld [vmem:[#allocation2 + $0x278] sm:$0xff]
        %v1321 = vld [vmem:[#allocation2 + $0x280] sm:$0xff]
        %v1322 = vld [vmem:[#allocation2 + $0x288] sm:$0xff]
        %v1323 = vld [vmem:[#allocation2 + $0x290] sm:$0xff]
        %v1324 = vld [vmem:[#allocation2 + $0x298] sm:$0xff]
        %v1325 = vld [vmem:[#allocation2 + $0x2a0] sm:$0xff]
        %v1326 = vld [vmem:[#allocation2 + $0x2a8] sm:$0xff]
        %v1327 = vld [vmem:[#allocation2 + $0x2b0] sm:$0xff]
        %v1328 = vld [vmem:[#allocation2 + $0x2b8] sm:$0xff]
        %v1329 = vld [vmem:[#allocation2 + $0x2c0] sm:$0xff]
        %v1330 = vld [vmem:[#allocation2 + $0x2c8] sm:$0xff]
        %v1331 = vld [vmem:[#allocation2 + $0x2d0] sm:$0xff]
        %v1332 = vld [vmem:[#allocation2 + $0x2d8] sm:$0xff]
        %v1333 = vld [vmem:[#allocation2 + $0x2e0] sm:$0xff]
        %v1334 = vld [vmem:[#allocation2 + $0x2e8] sm:$0xff]
        %v1335 = vld [vmem:[#allocation2 + $0x2f0] sm:$0xff]
        %v1336 = vld [vmem:[#allocation2 + $0x2f8] sm:$0xff]
        %v1337 = vld [vmem:[#allocation2 + $0x300] sm:$0xff]
        %v1338 = vld [vmem:[#allocation2 + $0x308] sm:$0xff]
        %v1339 = vld [vmem:[#allocation2 + $0x310] sm:$0xff]
        %v1340 = vld [vmem:[#allocation2 + $0x318] sm:$0xff]
        %v1341 = vld [vmem:[#allocation2 + $0x320] sm:$0xff]
        %v1342 = vld [vmem:[#allocation2 + $0x328] sm:$0xff]
        %v1343 = vld [vmem:[#allocation2 + $0x330] sm:$0xff]
        %v1344 = vld [vmem:[#allocation2 + $0x338] sm:$0xff]
        %v1345 = vld [vmem:[#allocation2 + $0x340] sm:$0xff]
        %v1346 = vld [vmem:[#allocation2 + $0x348] sm:$0xff]
        %v1347 = vld [vmem:[#allocation2 + $0x350] sm:$0xff]
        %v1348 = vld [vmem:[#allocation2 + $0x358] sm:$0xff]
        %v1349 = vld [vmem:[#allocation2 + $0x360] sm:$0xff]
        %v1350 = vld [vmem:[#allocation2 + $0x368] sm:$0xff]
        %v1351 = vld [vmem:[#allocation2 + $0x370] sm:$0xff]
        %v1352 = vld [vmem:[#allocation2 + $0x378] sm:$0xff]
        %v1353 = vld [vmem:[#allocation2 + $0x380] sm:$0xff]
        %v1354 = vld [vmem:[#allocation2 + $0x388] sm:$0xff]
        %v1355 = vld [vmem:[#allocation2 + $0x390] sm:$0xff]
        %v1356 = vld [vmem:[#allocation2 + $0x398] sm:$0xff]
        %v1357 = vld [vmem:[#allocation2 + $0x3a0] sm:$0xff]
        %v1358 = vld [vmem:[#allocation2 + $0x3a8] sm:$0xff]
        %v1359 = vld [vmem:[#allocation2 + $0x3b0] sm:$0xff]
        %v1360 = vld [vmem:[#allocation2 + $0x3b8] sm:$0xff]
        %v1361 = vld [vmem:[#allocation2 + $0x3c0] sm:$0xff]
        %v1362 = vld [vmem:[#allocation2 + $0x3c8] sm:$0xff]
        %v1363 = vld [vmem:[#allocation2 + $0x3d0] sm:$0xff]
        %v1364 = vld [vmem:[#allocation2 + $0x3d8] sm:$0xff]
        %v1365 = vld [vmem:[#allocation2 + $0x3e0] sm:$0xff]
        %v1366 = vld [vmem:[#allocation2 + $0x3e8] sm:$0xff]
        %v1367 = vld [vmem:[#allocation2 + $0x3f0] sm:$0xff]
        %v1368 = vld [vmem:[#allocation2 + $0x3f8] sm:$0xff]
        %v1369 = vld [vmem:[#allocation2 + $0x400] sm:$0xff]
        %v1370 = vld [vmem:[#allocation2 + $0x408] sm:$0xff]
        %v1371 = vld [vmem:[#allocation2 + $0x410] sm:$0xff]
        %v1372 = vld [vmem:[#allocation2 + $0x418] sm:$0xff]
        %v1373 = vld [vmem:[#allocation2 + $0x420] sm:$0xff]
        %v1374 = vld [vmem:[#allocation2 + $0x428] sm:$0xff]
        %v1375 = vld [vmem:[#allocation2 + $0x430] sm:$0xff]
        %v1376 = vld [vmem:[#allocation2 + $0x438] sm:$0xff]
        %v1377 = vld [vmem:[#allocation2 + $0x440] sm:$0xff]
        %v1378 = vld [vmem:[#allocation2 + $0x448] sm:$0xff]
        %v1379 = vld [vmem:[#allocation2 + $0x450] sm:$0xff]
        %v1380 = vld [vmem:[#allocation2 + $0x458] sm:$0xff]
        %v1381 = vld [vmem:[#allocation2 + $0x460] sm:$0xff]
        %v1382 = vld [vmem:[#allocation2 + $0x468] sm:$0xff]
        %v1383 = vld [vmem:[#allocation2 + $0x470] sm:$0xff]
        %v1384 = vld [vmem:[#allocation2 + $0x478] sm:$0xff]
        %v1385 = vld [vmem:[#allocation2 + $0x480] sm:$0xff]
        %v1386 = vld [vmem:[#allocation2 + $0x488] sm:$0xff]
        %v1387 = vld [vmem:[#allocation2 + $0x490] sm:$0xff]
        %v1388 = vld [vmem:[#allocation2 + $0x498] sm:$0xff]
        %v1389 = vld [vmem:[#allocation2 + $0x4a0] sm:$0xff]
        %v1390 = vld [vmem:[#allocation2 + $0x4a8] sm:$0xff]
        %v1391 = vld [vmem:[#allocation2 + $0x4b0] sm:$0xff]
        %v1392 = vld [vmem:[#allocation2 + $0x4b8] sm:$0xff]
        %v1393 = vld [vmem:[#allocation2 + $0x4c0] sm:$0xff]
        %v1394 = vld [vmem:[#allocation2 + $0x4c8] sm:$0xff]
        %v1395 = vld [vmem:[#allocation2 + $0x4d0] sm:$0xff]
        %v1396 = vld [vmem:[#allocation2 + $0x4d8] sm:$0xff]
        %v1397 = vld [vmem:[#allocation2 + $0x4e0] sm:$0xff]
        %v1398 = vld [vmem:[#allocation2 + $0x4e8] sm:$0xff]
        %v1399 = vld [vmem:[#allocation2 + $0x4f0] sm:$0xff]
        %v1400 = vld [vmem:[#allocation2 + $0x4f8] sm:$0xff]
        %v1401 = vld [vmem:[#allocation2 + $0x500] sm:$0xff]
        %v1402 = vld [vmem:[#allocation2 + $0x508] sm:$0xff]
        %v1403 = vld [vmem:[#allocation2 + $0x510] sm:$0xff]
        %v1404 = vld [vmem:[#allocation2 + $0x518] sm:$0xff]
        %v1405 = vld [vmem:[#allocation2 + $0x520] sm:$0xff]
        %v1406 = vld [vmem:[#allocation2 + $0x528] sm:$0xff]
        %v1407 = vld [vmem:[#allocation2 + $0x530] sm:$0xff]
        %v1408 = vld [vmem:[#allocation2 + $0x538] sm:$0xff]
        %v1409 = vld [vmem:[#allocation2 + $0x540] sm:$0xff]
        %v1410 = vld [vmem:[#allocation2 + $0x548] sm:$0xff]
        %v1411 = vld [vmem:[#allocation2 + $0x550] sm:$0xff]
        %v1412 = vld [vmem:[#allocation2 + $0x558] sm:$0xff]
        %v1413 = vld [vmem:[#allocation2 + $0x560] sm:$0xff]
        %v1414 = vld [vmem:[#allocation2 + $0x568] sm:$0xff]
        %v1415 = vld [vmem:[#allocation2 + $0x570] sm:$0xff]
        %v1416 = vld [vmem:[#allocation2 + $0x578] sm:$0xff]
        %v1417 = vld [vmem:[#allocation2 + $0x580] sm:$0xff]
        %v1418 = vld [vmem:[#allocation2 + $0x588] sm:$0xff]
        %v1419 = vld [vmem:[#allocation2 + $0x590] sm:$0xff]
        %v1420 = vld [vmem:[#allocation2 + $0x598] sm:$0xff]
        %v1421 = vld [vmem:[#allocation2 + $0x5a0] sm:$0xff]
        %v1422 = vld [vmem:[#allocation2 + $0x5a8] sm:$0xff]
        %v1423 = vld [vmem:[#allocation2 + $0x5b0] sm:$0xff]
        %v1424 = vld [vmem:[#allocation2 + $0x5b8] sm:$0xff]
        %v1425 = vld [vmem:[#allocation2 + $0x5c0] sm:$0xff]
        %v1426 = vld [vmem:[#allocation2 + $0x5c8] sm:$0xff]
        %v1427 = vld [vmem:[#allocation2 + $0x5d0] sm:$0xff]
        %v1428 = vld [vmem:[#allocation2 + $0x5d8] sm:$0xff]
        %v1429 = vld [vmem:[#allocation2 + $0x5e0] sm:$0xff]
        %vm1430 = vcmask 719872
        %v1432 = vsel %vm1430, %v1240, 0
        %1434 = vmatprep.subr.mxu0 %v1242
        %1435 = vmatpush1.msra.mxu0 %v1241
        %1436 = vmatprep.subr.mxu0 %v1249
        %1437 = vmatpush1.msra.mxu0 %v1248
        %1438 = vmatprep.subr.mxu0 %v1256
        %1439 = vmatpush1.msra.mxu0 %v1255
        %1440 = vmatprep.subr.mxu0 %v1263
        %1441 = vmatpush1.msra.mxu0 %v1262
        %1442 = vmatprep.subr.mxu0 %v1270
        %1443 = vmatpush1.msra.mxu0 %v1269
        %1444 = vmatprep.subr.mxu0 %v1277
        %1445 = vmatpush1.msra.mxu0 %v1276
        %1446 = vmatprep.subr.mxu0 %v1284
        %1447 = vmatpush1.msra.mxu0 %v1283
        %1448 = vmatprep.subr.mxu0 %v1291
        %1449 = vmatpush1.msra.mxu0 %v1290
        %1450 = vmatprep.subr.mxu0 %v1298
        %1451 = vmatpush1.msra.mxu0 %v1297
        %1452 = vmatprep.subr.mxu0 %v1305
        %1453 = vmatpush1.msra.mxu0 %v1304
        %1454 = vmatprep.subr.mxu0 %v1312
        %1455 = vmatpush1.msra.mxu0 %v1311
        %1456 = vmatprep.subr.mxu0 %v1319
        %1457 = vmatpush1.msra.mxu0 %v1318
        %1458 = vmatprep.subr.mxu0 %v1326
        %1459 = vmatpush1.msra.mxu0 %v1325
        %1460 = vmatprep.subr.mxu0 %v1333
        %1461 = vmatpush1.msra.mxu0 %v1332
        %1462 = vmatprep.subr.mxu0 %v1340
        %1463 = vmatpush1.msra.mxu0 %v1339
        %1464 = vmatprep.subr.mxu0 %v1347
        %1465 = vmatpush1.msra.mxu0 %v1346
        %1466 = vmatprep.subr.mxu0 %v1354
        %1467 = vmatpush1.msra.mxu0 %v1353
        %1468 = vmatprep.subr.mxu0 %v1361
        %1469 = vmatpush1.msra.mxu0 %v1360
        %1470 = vmatprep.subr.mxu0 %v1368
        %1471 = vmatpush1.msra.mxu0 %v1367
        %1472 = vmatprep.subr.mxu0 %v1375
        %1473 = vmatpush1.msra.mxu0 %v1374
        %1474 = vmatprep.subr.mxu0 %v1382
        %1475 = vmatpush1.msra.mxu0 %v1381
        %1476 = vmatprep.subr.mxu0 %v1389
        %1477 = vmatpush1.msra.mxu0 %v1388
        %1478 = vmatprep.subr.mxu0 %v1396
        %1479 = vmatpush1.msra.mxu0 %v1395
        %1480 = vmatprep.subr.mxu0 %v1403
        %1481 = vmatpush1.msra.mxu0 %v1402
        %1482 = vmatprep.subr.mxu0 %v1410
        %1483 = vmatpush1.msra.mxu0 %v1409
        %1484 = vmatprep.subr.mxu0 %v1417
        %1485 = vmatpush1.msra.mxu0 %v1416
        %1486 = vmatprep.subr.mxu0 %v1424
        %1487 = vmatpush1.msra.mxu0 %v1423
        %1488 = vmatprep.subr.mxu0 0.0
        %1489 = vmatpush1.msra.mxu0 0.0
        %1490 = vmatprep.subr.mxu0 0.0
        %1491 = vmatpush1.msra.mxu0 0.0
        %1492 = vmatprep.subr.mxu0 0.0
        %1493 = vmatpush1.msra.mxu0 0.0
        %1494 = vmatprep.subr.mxu0 0.0
        %1495 = vmatpush1.msra.mxu0 0.0
        %1496 = vmatprep.subr.mxu0 0.0
        %1497 = vmatpush1.msra.mxu0 0.0
        %1498 = vmatprep.mubr.f32.mxu0 %v1432
        %1499 = vmatmul.mubr.f32.gmra.mrb[0].mxu0 %v1239
        %v1500 = vpop.f32.mrb[0].mxu0
        %v1501 = vadd.f32 0.0, %v1500
        %v1502 = vpop.f32.mrb[0].mxu0
        %v1503 = vadd.f32 0.0, %v1502
        %1504 = vdwg.mxu0
        %1505 = vmatprep.subr.mxu0 %v1244
        %1506 = vmatpush1.msra.mxu0 %v1243
        %1507 = vmatprep.subr.mxu0 %v1251
        %1508 = vmatpush1.msra.mxu0 %v1250
        %1509 = vmatprep.subr.mxu0 %v1258
        %1510 = vmatpush1.msra.mxu0 %v1257
        %1511 = vmatprep.subr.mxu0 %v1265
        %1512 = vmatpush1.msra.mxu0 %v1264
        %1513 = vmatprep.subr.mxu0 %v1272
        %1514 = vmatpush1.msra.mxu0 %v1271
        %1515 = vmatprep.subr.mxu0 %v1279
        %1516 = vmatpush1.msra.mxu0 %v1278
        %1517 = vmatprep.subr.mxu0 %v1286
        %1518 = vmatpush1.msra.mxu0 %v1285
        %1519 = vmatprep.subr.mxu0 %v1293
        %1520 = vmatpush1.msra.mxu0 %v1292
        %1521 = vmatprep.subr.mxu0 %v1300
        %1522 = vmatpush1.msra.mxu0 %v1299
        %1523 = vmatprep.subr.mxu0 %v1307
        %1524 = vmatpush1.msra.mxu0 %v1306
        %1525 = vmatprep.subr.mxu0 %v1314
        %1526 = vmatpush1.msra.mxu0 %v1313
        %1527 = vmatprep.subr.mxu0 %v1321
        %1528 = vmatpush1.msra.mxu0 %v1320
        %1529 = vmatprep.subr.mxu0 %v1328
        %1530 = vmatpush1.msra.mxu0 %v1327
        %1531 = vmatprep.subr.mxu0 %v1335
        %1532 = vmatpush1.msra.mxu0 %v1334
        %1533 = vmatprep.subr.mxu0 %v1342
        %1534 = vmatpush1.msra.mxu0 %v1341
        %1535 = vmatprep.subr.mxu0 %v1349
        %1536 = vmatpush1.msra.mxu0 %v1348
        %1537 = vmatprep.subr.mxu0 %v1356
        %1538 = vmatpush1.msra.mxu0 %v1355
        %1539 = vmatprep.subr.mxu0 %v1363
        %1540 = vmatpush1.msra.mxu0 %v1362
        %1541 = vmatprep.subr.mxu0 %v1370
        %1542 = vmatpush1.msra.mxu0 %v1369
        %1543 = vmatprep.subr.mxu0 %v1377
        %1544 = vmatpush1.msra.mxu0 %v1376
        %1545 = vmatprep.subr.mxu0 %v1384
        %1546 = vmatpush1.msra.mxu0 %v1383
        %1547 = vmatprep.subr.mxu0 %v1391
        %1548 = vmatpush1.msra.mxu0 %v1390
        %1549 = vmatprep.subr.mxu0 %v1398
        %1550 = vmatpush1.msra.mxu0 %v1397
        %1551 = vmatprep.subr.mxu0 %v1405
        %1552 = vmatpush1.msra.mxu0 %v1404
        %1553 = vmatprep.subr.mxu0 %v1412
        %1554 = vmatpush1.msra.mxu0 %v1411
        %1555 = vmatprep.subr.mxu0 %v1419
        %1556 = vmatpush1.msra.mxu0 %v1418
        %1557 = vmatprep.subr.mxu0 %v1426
        %1558 = vmatpush1.msra.mxu0 %v1425
        %1559 = vmatprep.subr.mxu0 0.0
        %1560 = vmatpush1.msra.mxu0 0.0
        %1561 = vmatprep.subr.mxu0 0.0
        %1562 = vmatpush1.msra.mxu0 0.0
        %1563 = vmatprep.subr.mxu0 0.0
        %1564 = vmatpush1.msra.mxu0 0.0
        %1565 = vmatprep.subr.mxu0 0.0
        %1566 = vmatpush1.msra.mxu0 0.0
        %1567 = vmatprep.subr.mxu0 0.0
        %1568 = vmatpush1.msra.mxu0 0.0
        %1569 = vmatprep.mubr.f32.mxu0 %v1432
        %1570 = vmatmul.mubr.f32.gmra.mrb[0].mxu0 %v1239
        %v1571 = vpop.f32.mrb[0].mxu0
        %v1572 = vadd.f32 0.0, %v1571
        %v1573 = vpop.f32.mrb[0].mxu0
        %v1574 = vadd.f32 0.0, %v1573
        %1575 = vdwg.mxu0
        %1576 = vmatprep.subr.mxu0 %v1246
        %1577 = vmatpush1.msra.mxu0 %v1245
        %1578 = vmatprep.subr.mxu0 %v1253
        %1579 = vmatpush1.msra.mxu0 %v1252
        %1580 = vmatprep.subr.mxu0 %v1260
        %1581 = vmatpush1.msra.mxu0 %v1259
        %1582 = vmatprep.subr.mxu0 %v1267
        %1583 = vmatpush1.msra.mxu0 %v1266
        %1584 = vmatprep.subr.mxu0 %v1274
        %1585 = vmatpush1.msra.mxu0 %v1273
        %1586 = vmatprep.subr.mxu0 %v1281
        %1587 = vmatpush1.msra.mxu0 %v1280
        %1588 = vmatprep.subr.mxu0 %v1288
        %1589 = vmatpush1.msra.mxu0 %v1287
        %1590 = vmatprep.subr.mxu0 %v1295
        %1591 = vmatpush1.msra.mxu0 %v1294
        %1592 = vmatprep.subr.mxu0 %v1302
        %1593 = vmatpush1.msra.mxu0 %v1301
        %1594 = vmatprep.subr.mxu0 %v1309
        %1595 = vmatpush1.msra.mxu0 %v1308
        %1596 = vmatprep.subr.mxu0 %v1316
        %1597 = vmatpush1.msra.mxu0 %v1315
        %1598 = vmatprep.subr.mxu0 %v1323
        %1599 = vmatpush1.msra.mxu0 %v1322
        %1600 = vmatprep.subr.mxu0 %v1330
        %1601 = vmatpush1.msra.mxu0 %v1329
        %1602 = vmatprep.subr.mxu0 %v1337
        %1603 = vmatpush1.msra.mxu0 %v1336
        %1604 = vmatprep.subr.mxu0 %v1344
        %1605 = vmatpush1.msra.mxu0 %v1343
        %1606 = vmatprep.subr.mxu0 %v1351
        %1607 = vmatpush1.msra.mxu0 %v1350
        %1608 = vmatprep.subr.mxu0 %v1358
        %1609 = vmatpush1.msra.mxu0 %v1357
        %1610 = vmatprep.subr.mxu0 %v1365
        %1611 = vmatpush1.msra.mxu0 %v1364
        %1612 = vmatprep.subr.mxu0 %v1372
        %1613 = vmatpush1.msra.mxu0 %v1371
        %1614 = vmatprep.subr.mxu0 %v1379
        %1615 = vmatpush1.msra.mxu0 %v1378
        %1616 = vmatprep.subr.mxu0 %v1386
        %1617 = vmatpush1.msra.mxu0 %v1385
        %1618 = vmatprep.subr.mxu0 %v1393
        %1619 = vmatpush1.msra.mxu0 %v1392
        %1620 = vmatprep.subr.mxu0 %v1400
        %1621 = vmatpush1.msra.mxu0 %v1399
        %1622 = vmatprep.subr.mxu0 %v1407
        %1623 = vmatpush1.msra.mxu0 %v1406
        %1624 = vmatprep.subr.mxu0 %v1414
        %1625 = vmatpush1.msra.mxu0 %v1413
        %1626 = vmatprep.subr.mxu0 %v1421
        %1627 = vmatpush1.msra.mxu0 %v1420
        %1628 = vmatprep.subr.mxu0 %v1428
        %1629 = vmatpush1.msra.mxu0 %v1427
        %1630 = vmatprep.subr.mxu0 0.0
        %1631 = vmatpush1.msra.mxu0 0.0
        %1632 = vmatprep.subr.mxu0 0.0
        %1633 = vmatpush1.msra.mxu0 0.0
        %1634 = vmatprep.subr.mxu0 0.0
        %1635 = vmatpush1.msra.mxu0 0.0
        %1636 = vmatprep.subr.mxu0 0.0
        %1637 = vmatpush1.msra.mxu0 0.0
        %1638 = vmatprep.subr.mxu0 0.0
        %1639 = vmatpush1.msra.mxu0 0.0
        %1640 = vmatprep.mubr.f32.mxu0 %v1432
        %1641 = vmatmul.mubr.f32.gmra.mrb[0].mxu0 %v1239
        %v1642 = vpop.f32.mrb[0].mxu0
        %v1643 = vadd.f32 0.0, %v1642
        %v1644 = vpop.f32.mrb[0].mxu0
        %v1645 = vadd.f32 0.0, %v1644
        %1646 = vdwg.mxu0
        %1647 = vmatprep.subr.mxu0 0.0
        %1648 = vmatpush1.msra.mxu0 %v1247
        %1649 = vmatprep.subr.mxu0 0.0
        %1650 = vmatpush1.msra.mxu0 %v1254
        %1651 = vmatprep.subr.mxu0 0.0
        %1652 = vmatpush1.msra.mxu0 %v1261
        %1653 = vmatprep.subr.mxu0 0.0
        %1654 = vmatpush1.msra.mxu0 %v1268
        %1655 = vmatprep.subr.mxu0 0.0
        %1656 = vmatpush1.msra.mxu0 %v1275
        %1657 = vmatprep.subr.mxu0 0.0
        %1658 = vmatpush1.msra.mxu0 %v1282
        %1659 = vmatprep.subr.mxu0 0.0
        %1660 = vmatpush1.msra.mxu0 %v1289
        %1661 = vmatprep.subr.mxu0 0.0
        %1662 = vmatpush1.msra.mxu0 %v1296
        %1663 = vmatprep.subr.mxu0 0.0
        %1664 = vmatpush1.msra.mxu0 %v1303
        %1665 = vmatprep.subr.mxu0 0.0
        %1666 = vmatpush1.msra.mxu0 %v1310
        %1667 = vmatprep.subr.mxu0 0.0
        %1668 = vmatpush1.msra.mxu0 %v1317
        %1669 = vmatprep.subr.mxu0 0.0
        %1670 = vmatpush1.msra.mxu0 %v1324
        %1671 = vmatprep.subr.mxu0 0.0
        %1672 = vmatpush1.msra.mxu0 %v1331
        %1673 = vmatprep.subr.mxu0 0.0
        %1674 = vmatpush1.msra.mxu0 %v1338
        %1675 = vmatprep.subr.mxu0 0.0
        %1676 = vmatpush1.msra.mxu0 %v1345
        %1677 = vmatprep.subr.mxu0 0.0
        %1678 = vmatpush1.msra.mxu0 %v1352
        %1679 = vmatprep.subr.mxu0 0.0
        %1680 = vmatpush1.msra.mxu0 %v1359
        %1681 = vmatprep.subr.mxu0 0.0
        %1682 = vmatpush1.msra.mxu0 %v1366
        %1683 = vmatprep.subr.mxu0 0.0
        %1684 = vmatpush1.msra.mxu0 %v1373
        %1685 = vmatprep.subr.mxu0 0.0
        %1686 = vmatpush1.msra.mxu0 %v1380
        %1687 = vmatprep.subr.mxu0 0.0
        %1688 = vmatpush1.msra.mxu0 %v1387
        %1689 = vmatprep.subr.mxu0 0.0
        %1690 = vmatpush1.msra.mxu0 %v1394
        %1691 = vmatprep.subr.mxu0 0.0
        %1692 = vmatpush1.msra.mxu0 %v1401
        %1693 = vmatprep.subr.mxu0 0.0
        %1694 = vmatpush1.msra.mxu0 %v1408
        %1695 = vmatprep.subr.mxu0 0.0
        %1696 = vmatpush1.msra.mxu0 %v1415
        %1697 = vmatprep.subr.mxu0 0.0
        %1698 = vmatpush1.msra.mxu0 %v1422
        %1699 = vmatprep.subr.mxu0 0.0
        %1700 = vmatpush1.msra.mxu0 %v1429
        %1701 = vmatprep.subr.mxu0 0.0
        %1702 = vmatpush1.msra.mxu0 0.0
        %1703 = vmatprep.subr.mxu0 0.0
        %1704 = vmatpush1.msra.mxu0 0.0
        %1705 = vmatprep.subr.mxu0 0.0
        %1706 = vmatpush1.msra.mxu0 0.0
        %1707 = vmatprep.subr.mxu0 0.0
        %1708 = vmatpush1.msra.mxu0 0.0
        %1709 = vmatprep.subr.mxu0 0.0
        %1710 = vmatpush1.msra.mxu0 0.0
        %1711 = vmatprep.mubr.f32.mxu0 %v1432
        %1712 = vmatmul.mubr.f32.gmra.mrb[0].mxu0 %v1239
        %v1713 = vpop.f32.mrb[0].mxu0
        %v1714 = vadd.f32 0.0, %v1713
        %v1715 = vpop.f32.mrb[0].mxu0
        %1716 = vdwg.mxu0
        %v1717 = vld [vmem:[%s2] sm:$0xff]
        %v1719 = vlaneseq
        %v1720 = vshrl.u32 %v1719, 7
        %v1721 = vsub.s32 0, %v1720
        %v1722 = vrot.slane %v1717, %v1721
        %v1723 = vlaneseq
        %v1724 = vshrl.u32 %v1723, 7
        %v1725 = vsub.s32 1, %v1724
        %v1726 = vrot.slane %v1717, %v1725
        %v1727 = vlaneseq
        %v1728 = vshrl.u32 %v1727, 7
        %v1729 = vsub.s32 2, %v1728
        %v1730 = vrot.slane %v1717, %v1729
        %v1731 = vlaneseq
        %v1732 = vshrl.u32 %v1731, 7
        %v1733 = vsub.s32 3, %v1732
        %v1734 = vrot.slane %v1717, %v1733
        %v1735 = vlaneseq
        %v1736 = vshrl.u32 %v1735, 7
        %v1737 = vsub.s32 4, %v1736
        %v1738 = vrot.slane %v1717, %v1737
        %v1739 = vlaneseq
        %v1740 = vshrl.u32 %v1739, 7
        %v1741 = vsub.s32 5, %v1740
        %v1742 = vrot.slane %v1717, %v1741
        %v1743 = vlaneseq
        %v1744 = vshrl.u32 %v1743, 7
        %v1745 = vsub.s32 6, %v1744
        %v1746 = vrot.slane %v1717, %v1745
        %v1754 = vmul.f32 %v1501, %v1722
        %v1755 = vmul.f32 %v1503, %v1726
        %v1756 = vmul.f32 %v1572, %v1730
        %v1757 = vmul.f32 %v1574, %v1734
        %v1758 = vmul.f32 %v1643, %v1738
        %v1759 = vmul.f32 %v1645, %v1742
        %v1760 = vmul.f32 %v1714, %v1746
        %v1761 = vadd.f32 %v1754, %v1755
        %v1762 = vadd.f32 %v1761, %v1756
        %v1763 = vadd.f32 %v1762, %v1757
        %v1764 = vadd.f32 %v1763, %v1758
        %v1765 = vadd.f32 %v1764, %v1759
        %v1766 = vadd.f32 %v1765, %v1760
        %1767 = vadd.xlane.f32.xlu0 %v1766
        %v1768 = vpop.xlane.xlu0 %1767
        %v1769 = vmul.f32 %v1754, %v1501
        %v1770 = vmul.f32 %v1755, %v1503
        %v1771 = vmul.f32 %v1756, %v1572
        %v1772 = vmul.f32 %v1757, %v1574
        %v1773 = vmul.f32 %v1758, %v1643
        %v1774 = vmul.f32 %v1759, %v1645
        %v1775 = vmul.f32 %v1760, %v1714
        %v1776 = vadd.f32 %v1769, %v1770
        %v1777 = vadd.f32 %v1776, %v1771
        %v1778 = vadd.f32 %v1777, %v1772
        %v1779 = vadd.f32 %v1778, %v1773
        %v1780 = vadd.f32 %v1779, %v1774
        %v1781 = vadd.f32 %v1780, %v1775
        %1782 = vadd.xlane.f32.xlu0 %v1781
        %v1783 = vpop.xlane.xlu0 %1782
        %v1784 = vmul.f32 %v1768, 0.001953125
        %v1785 = vmul.f32 %v1783, 0.001953125
        %v1786 = vmul.f32 %v1784, %v1784
        %v1787 = vsub.f32 %v1785, %v1786
        %v1788 = vsub.f32 %v1501, %v1784
        %v1789 = vsub.f32 %v1503, %v1784
        %v1790 = vsub.f32 %v1572, %v1784
        %v1791 = vsub.f32 %v1574, %v1784
        %v1792 = vsub.f32 %v1643, %v1784
        %v1793 = vsub.f32 %v1645, %v1784
        %v1794 = vsub.f32 %v1714, %v1784
        %v1795 = vadd.f32 %v1787, 1e-05
        %v1796 = vrsqrt.pop %v1795
        %v1797 = vmul.f32 %v1788, %v1796
        %v1798 = vmul.f32 %v1789, %v1796
        %v1799 = vmul.f32 %v1790, %v1796
        %v1800 = vmul.f32 %v1791, %v1796
        %v1801 = vmul.f32 %v1792, %v1796
        %v1802 = vmul.f32 %v1793, %v1796
        %v1803 = vmul.f32 %v1794, %v1796
        %vm1804 = vcmp.ge.f32.partialorder %v1797, 0.0
        %vm1805 = vcmp.ge.f32.partialorder %v1798, 0.0
        %vm1806 = vcmp.ge.f32.partialorder %v1799, 0.0
        %vm1807 = vcmp.ge.f32.partialorder %v1800, 0.0
        %vm1808 = vcmp.ge.f32.partialorder %v1801, 0.0
        %vm1809 = vcmp.ge.f32.partialorder %v1802, 0.0
        %vm1810 = vcmp.ge.f32.partialorder %v1803, 0.0
        %v1811 = vmul.f32 %v1797, 0.2
        %v1812 = vmul.f32 %v1798, 0.2
        %v1813 = vmul.f32 %v1799, 0.2
        %v1814 = vmul.f32 %v1800, 0.2
        %v1815 = vmul.f32 %v1801, 0.2
        %v1816 = vmul.f32 %v1802, 0.2
        %v1817 = vmul.f32 %v1803, 0.2
        %v1818 = vsel %vm1804, %v1797, %v1811
        %v1819 = vsel %vm1805, %v1798, %v1812
        %v1820 = vsel %vm1806, %v1799, %v1813
        %v1821 = vsel %vm1807, %v1800, %v1814
        %v1822 = vsel %vm1808, %v1801, %v1815
        %v1823 = vsel %vm1809, %v1802, %v1816
        %v1824 = vsel %vm1810, %v1803, %v1817
        %1825 = vst [vmem:[%s221] sm:$0xff] %v1818
        %1826 = vst [vmem:[%s221 + $0x8] sm:$0xff] %v1819
        %1827 = vst [vmem:[%s221 + $0x10] sm:$0xff] %v1820
        %1828 = vst [vmem:[%s221 + $0x18] sm:$0xff] %v1821
        %1829 = vst [vmem:[%s221 + $0x20] sm:$0xff] %v1822
        %1830 = vst [vmem:[%s221 + $0x28] sm:$0xff] %v1823
        %1831 = vst [vmem:[%s221 + $0x30] sm:$0xff] %v1824
        %s1832 = sand.u32 %s116, 1
        %s1833 = scalar_lea.sflag [#allocation5], %s1832
        %s1834 = sand.u32 %s116, 1
        %s1835 = smul.addr %s1834, 56
        %s1836 = scalar_lea.vmem [#allocation8], %s1835
        // Predicated region
        $region45: #{tpu_custom_call.1} parent=31 // pred_check
          %p1837 = pneg %p126
        $region46: #{tpu_custom_call.1} parent=31 // pred_check_branch
          %1839 = sbr.rel (%p1837) target = $region48
        $region47: #{tpu_custom_call.1} parent=31 // pred_region
          %s1841 = ssub.s32 896, 896
          %1842 = vsyncadd %s1833, %s1841
          %s1843 = smul.addr %s26, 7
          %s1844 = smul.addr %s25, 7
          %s1845 = sadd.s32 %s1843, %s1844
          %s1846 = smul.addr %s1845, 128
          %s1847 = scalar_lea.hbm %s3, %s1846
          %s1849 = sshll.u32 %s1836, 4
          %s1850 = int_to_ptr.vmem [resolvable:$true] %s1849
          %1852 = dma.vmem_to_hbm [thread:$0]  %s1850, 896, %s1847, %s1833
        $region48: #{tpu_custom_call.1} parent=31 // pred_fallthru
          _
      $region32: #{tpu_custom_call.1} parent=5 // pred_fallthru
        _
      %p1853 = scmp.le.s32.totalorder 2, %s16
      // Predicated region
      $region49: #{tpu_custom_call.1} parent=5 // pred_check
        %p1854 = pneg %p1853
      $region50: #{tpu_custom_call.1} parent=5 // pred_check_branch
        %1856 = sbr.rel (%p1854) target = $region52
      $region51: #{tpu_custom_call.1} parent=5 // pred_region
        %s1857 = ssub.s32 %s16, 2
        // Predicated region
        $region53: #{tpu_custom_call.1} parent=51 // pred_check
          %p1858 = pneg %p132
        $region54: #{tpu_custom_call.1} parent=51 // pred_check_branch
          %1860 = sbr.rel (%p1858) target = $region56
        $region55: #{tpu_custom_call.1} parent=51 // pred_region
          %s1861 = sand.u32 %s117, 1
          %s1862 = scalar_lea.sflag [#allocation5], %s1861
          %s1863 = sand.u32 %s117, 1
          %s1864 = smul.addr %s1863, 56
          %s1865 = scalar_lea.vmem [#allocation8], %s1864
          %1866 = dma.done %s1862, 896
        $region56: #{tpu_custom_call.1} parent=51 // pred_fallthru
          _
      $region52: #{tpu_custom_call.1} parent=5 // pred_fallthru
        _
    $region6: #{tpu_custom_call.1} parent=1 // loop_footer
      %s20 = sadd.s32 1, %s16
    $region7: #{tpu_custom_call.1} parent=1 // loop_footer_branch
      %15 = sbr.rel target = $region3
    $region8: #{tpu_custom_call.1} parent=1 // loop_exit
      _
    %1867 = vsyncpa [#allocation4], 1
    %s1868 = scalar_lea.sflag [#allocation4], 1
    %1869 = vsyncpa %s1868, 1
    %1870 = vsyncpa [#allocation7], 1
    %1871 = vsyncpa [#allocation5], 1
    %s1872 = scalar_lea.sflag [#allocation5], 1
    %1873 = vsyncpa %s1872, 1

</llo_original>
